<compile_context>
chip_gen: v6e
topology: v6e:2x2x1
jax: 0.10.0
libtpu: 0.0.40
codegen_flags: <defaults>
</compile_context>

<pallas_src>
import jax
import jax.numpy as jnp
from jax.experimental import pallas as pl
from jax.experimental.pallas import tpu as pltpu


# ---------------------------------------------------------------------------
# helpers
# ---------------------------------------------------------------------------
def _round_up(x, m):
    return ((x + m - 1) // m) * m


def _pad2(a, rows, cols):
    return jnp.pad(a, ((0, rows - a.shape[0]), (0, cols - a.shape[1])))


def _vmem_budget():
    """Generation-aware scoped-VMEM limit and fused-path budget (bytes)."""
    cap = 64 * 1024 * 1024          # conservative default (v7x per-TC VMEM)
    try:
        info = pltpu.get_tpu_info()
        cap = int(getattr(info, "vmem_capacity_bytes", cap)) or cap
    except Exception:
        pass
    if cap <= 0:
        cap = 64 * 1024 * 1024
    vmem_limit = (cap * 3) // 4     # what we ask the compiler for
    fused_budget = (vmem_limit * 4) // 5
    return int(vmem_limit), int(fused_budget)


def _fused_batch_tile(Mp):
    # Prefer the biggest batch tile that still leaves >=2 grid steps (v7x has
    # two TensorCores); otherwise take the whole (padded) batch in one tile.
    for c in (512, 256, 128):
        if Mp % c == 0 and Mp // c >= 2:
            return c
    return Mp


def _pick_batch_tile_tiled(Mp):
    # One M tile when the batch is small -> weights stream from HBM once.
    if Mp <= 512:
        return Mp
    for c in (512, 256, 128):
        if Mp % c == 0:
            return c
    return Mp


def _pick_feat_tile(dim):
    # dim is a multiple of 128.  Full extent when small (fewer grid steps,
    # full MXU feed); otherwise largest 256-multiple tile (v6e/v7x MXU is
    # 2x256x256), capped at 1024 so a double-buffered bf16 weight tile is
    # <= 4 MiB.
    if dim <= 1024:
        return dim
    for c in (1024, 512, 256, 128):
        if dim % c == 0:
            return c
    return 128


# ---------------------------------------------------------------------------
# Kernel 1: whole MLP fused into one pallas_call (per-layer VMEM-resident
# weights, activation carried in registers/VMEM between layers)
# ---------------------------------------------------------------------------
def _make_fused_mlp_kernel(n_layers, compute_dtype):
    def kernel(*refs):
        x_ref = refs[0]
        w_refs = refs[1:1 + n_layers]                 # (Kp_l, Np_l), compute_dtype
        b_refs = refs[1 + n_layers:1 + 2 * n_layers]  # (1, Np_l), f32
        o_ref = refs[1 + 2 * n_layers]

        h = x_ref[...].astype(compute_dtype)          # (tm, Kp_0)
        y = h
        for l in range(n_layers):                     # static unroll (few layers)
            y = jnp.dot(h, w_refs[l][...], preferred_element_type=jnp.float32)
            y = jnp.maximum(y + b_refs[l][...], 0.0)  # f32 bias + ReLU epilogue
            # TODO(synk): training-mode Dropout(p>0) would fuse pltpu.prng_seed
            # + pltpu.prng_random_bits masking here; module default p=0.0.
            if l + 1 < n_layers:
                h = y.astype(compute_dtype)           # bf16 inter-layer activation
        o_ref[...] = y.astype(o_ref.dtype)
    return kernel


def _mlp_fused(weights, biases, x, Mp, tm, feat_p, out_dim, vmem_limit):
    M, in_dim = x.shape
    Kp0, Np_last = feat_p[0], feat_p[-1]
    L = len(weights)

    if Mp == M and Kp0 == in_dim:
        x_p = x                                       # already aligned: no pad op
    else:
        x_p = jnp.pad(x, ((0, Mp - M), (0, Kp0 - in_dim)))

    kernel = _make_fused_mlp_kernel(L, weights[0].dtype)

    flops = 2 * Mp * sum(int(w.shape[0]) * int(w.shape[1]) for w in weights)
    bytes_accessed = (int(x_p.size) * x_p.dtype.itemsize
                      + sum(int(w.size) * w.dtype.itemsize for w in weights)
                      + sum(int(b.size) * b.dtype.itemsize for b in biases)
                      + Mp * Np_last * x.dtype.itemsize)

    in_specs = [pl.BlockSpec((tm, Kp0), lambda i: (i, 0))]
    # Constant index maps -> these blocks are DMA'd once and stay VMEM-resident.
    in_specs += [pl.BlockSpec(tuple(w.shape), lambda i: (0, 0)) for w in weights]
    in_specs += [pl.BlockSpec(tuple(b.shape), lambda i: (0, 0)) for b in biases]

    out_p = pl.pallas_call(
        kernel,
        out_shape=jax.ShapeDtypeStruct((Mp, Np_last), x.dtype),
        grid_spec=pltpu.PrefetchScalarGridSpec(
            num_scalar_prefetch=0,
            grid=(Mp // tm,),
            in_specs=in_specs,
            out_specs=pl.BlockSpec((tm, Np_last), lambda i: (i, 0)),
        ),
        compiler_params=pltpu.CompilerParams(
            dimension_semantics=("parallel",),
            vmem_limit_bytes=int(vmem_limit),
        ),
        cost_estimate=pl.CostEstimate(flops=int(flops), transcendentals=0,
                                      bytes_accessed=int(bytes_accessed)),
    )(x_p, *weights, *biases)
    return out_p[:M, :out_dim]


# ---------------------------------------------------------------------------
# Kernel 2: per-layer M/N/K-tiled Linear+ReLU (fallback for large layers)
# ---------------------------------------------------------------------------
def linear_relu_tiled_kernel(x_ref, w_ref, b_ref, o_ref, acc_ref):
    @pl.when(pl.program_id(2) == 0)
    def _():
        acc_ref[...] = jnp.zeros_like(acc_ref)

    acc_ref[...] += jnp.dot(x_ref[...].astype(w_ref.dtype), w_ref[...],
                            preferred_element_type=jnp.float32)

    @pl.when(pl.program_id(2) == pl.num_programs(2) - 1)
    def _():
        o_ref[...] = jnp.maximum(acc_ref[...] + b_ref[...], 0.0).astype(o_ref.dtype)


def _linear_relu_tiled(x, w, b2, *, tm, tn, tk, out_dtype, vmem_limit):
    """y = relu(x @ w + b), tiled over (M, N, K) with an f32 VMEM accumulator."""
    M, K = x.shape
    Kw, N = w.shape
    assert K == Kw and M % tm == 0 and N % tn == 0 and K % tk == 0

    flops = 2 * M * K * N
    bytes_accessed = (int(x.size) * x.dtype.itemsize
                      + int(w.size) * w.dtype.itemsize
                      + int(b2.size) * b2.dtype.itemsize
                      + M * N * jnp.dtype(out_dtype).itemsize)

    return pl.pallas_call(
        linear_relu_tiled_kernel,
        out_shape=jax.ShapeDtypeStruct((M, N), out_dtype),
        grid_spec=pltpu.PrefetchScalarGridSpec(
            num_scalar_prefetch=0,
            grid=(M // tm, N // tn, K // tk),
            in_specs=[
                pl.BlockSpec((tm, tk), lambda i, j, k: (i, k)),  # x tile
                pl.BlockSpec((tk, tn), lambda i, j, k: (k, j)),  # weight tile
                pl.BlockSpec((1, tn), lambda i, j, k: (0, j)),   # bias tile (f32)
            ],
            out_specs=pl.BlockSpec((tm, tn), lambda i, j, k: (i, j)),
            scratch_shapes=[pltpu.VMEM((tm, tn), jnp.float32)],
        ),
        compiler_params=pltpu.CompilerParams(
            dimension_semantics=("parallel", "parallel", "arbitrary"),
            vmem_limit_bytes=int(vmem_limit),
        ),
        cost_estimate=pl.CostEstimate(flops=int(flops), transcendentals=0,
                                      bytes_accessed=int(bytes_accessed)),
    )(x, w, b2)


# ---------------------------------------------------------------------------
# Parameter construction (torch.nn.Linear-style init; weights as (fan_in, fan_out))
# ---------------------------------------------------------------------------
def init_linear_params(key, fan_in, fan_out, dtype=jnp.float32):
    kw, kb = jax.random.split(key)
    bound = 1.0 / jnp.sqrt(jnp.asarray(fan_in, dtype))
    w = jax.random.uniform(kw, (fan_in, fan_out), dtype, -bound, bound)
    b = jax.random.uniform(kb, (fan_out,), dtype, -bound, bound)
    return w, b


def make_mlp_base_layer_params(key, n_linear, in_channels, mid_channels, out_channels):
    dims = [(in_channels, mid_channels)]
    dims += [(mid_channels, mid_channels)] * n_linear
    dims += [(mid_channels, out_channels)]
    keys = jax.random.split(key, len(dims))
    return [init_linear_params(k, fi, fo) for k, (fi, fo) in zip(keys, dims)]


# ---------------------------------------------------------------------------
# One-time parameter preparation (padding / casting hoisted out of forward)
# ---------------------------------------------------------------------------
def prepare_mlp_base_layer(params, *, compute_dtype=jnp.bfloat16):
    """Pad each layer to lane-dense (mult-of-128) widths and cast MXU operands.

    bf16 operands are MXU-native on v5e/v6e/v7x; accumulation and the bias+ReLU
    epilogue stay f32 inside the kernels.
    """
    # TODO(synk): an fp8 weight-storage path (per-channel scales applied in the
    # f32 epilogue) would further halve VMEM/HBM bytes on v7x; not implemented.
    feat = [params[0][0].shape[0]] + [w.shape[1] for w, _ in params]
    feat_p = [_round_up(d, 128) for d in feat]
    weights, biases = [], []
    for l, (w, b) in enumerate(params):
        Kp, Np = feat_p[l], feat_p[l + 1]
        weights.append(_pad2(w, Kp, Np).astype(compute_dtype))
        biases.append(jnp.pad(b, (0, Np - b.shape[0])).reshape(1, Np)
                      .astype(jnp.float32))
    return {
        "weights": weights,
        "biases": biases,
        "in_dim": int(feat[0]),
        "out_dim": int(feat[-1]),
        "feat_p": feat_p,
        "compute_dtype": compute_dtype,
    }


# ---------------------------------------------------------------------------
# Forward: h = input; for block in blocks: h = Linear -> ReLU -> Dropout(p=0)
# ---------------------------------------------------------------------------
def mlp_base_layer_forward(prepared, x, *, force_tiled=False):
    M, in_dim = x.shape
    assert in_dim == prepared["in_dim"]
    weights, biases = prepared["weights"], prepared["biases"]
    feat_p = prepared["feat_p"]
    out_dim = prepared["out_dim"]
    cdt = prepared["compute_dtype"]
    cdt_size = jnp.dtype(cdt).itemsize
    Kp0, Np_last = feat_p[0], feat_p[-1]
    L = len(weights)

    vmem_limit, fused_budget = _vmem_budget()

    # Batch padding: lane/sublane-friendly; skipped later if already aligned.
    Mp = _round_up(M, 128) if M >= 128 else _round_up(M, 8)

    w_bytes = sum(int(w.size) * cdt_size for w in weights)
    b_bytes = sum(int(b.size) * 4 for b in biases)

    if not force_tiled:
        tm = _fused_batch_tile(Mp)
        max_feat = max(feat_p)
        est_vmem = (2 * (w_bytes + b_bytes)                 # weight/bias windows (2x buffered)
                    + 2 * tm * Kp0 * x.dtype.itemsize       # input tile (double-buffered)
                    + 2 * tm * Np_last * x.dtype.itemsize   # output tile (double-buffered)
                    + 2 * tm * max_feat * (4 + cdt_size))   # in-kernel activations (slack)
        if est_vmem <= fused_budget:
            # Whole MLP in one kernel; activations never leave VMEM.
            return _mlp_fused(weights, biases, x, Mp, tm, feat_p, out_dim,
                              vmem_limit)

    # Fallback: per-layer M/N/K-tiled Linear+ReLU (scales to weights too big
    # for VMEM residency).  One M tile when the batch fits, so each weight is
    # streamed from HBM exactly once per forward.
    tm = _pick_batch_tile_tiled(Mp)
    if Mp == M and Kp0 == in_dim:
        h = x
    else:
        h = jnp.pad(x, ((0, Mp - M), (0, Kp0 - in_dim)))
    for l in range(L):
        w, b2 = weights[l], biases[l]
        Kp, Np = w.shape
        out_dtype = x.dtype if l == L - 1 else cdt          # bf16 intermediates
        h = _linear_relu_tiled(h, w, b2, tm=tm,
                               tn=_pick_feat_tile(Np), tk=_pick_feat_tile(Kp),
                               out_dtype=out_dtype, vmem_limit=vmem_limit)
    return h[:M, :out_dim]


# ---------------------------------------------------------------------------
if __name__ == "__main__":
    key = jax.random.PRNGKey(0)
    k_params, k_x, k_params2, k_x2 = jax.random.split(key, 4)

    # ---- config 1: batch=256 (2 batch-tile grid steps), 4 layers -----------
    n_linear = 2
    batch, in_channels, mid_channels, out_channels = 256, 32, 64, 32
    params = make_mlp_base_layer_params(
        k_params, n_linear, in_channels, mid_channels, out_channels)
    x = jax.random.normal(k_x, (batch, in_channels), jnp.float32)

    ref = x
    for w, b in params:
        ref = jnp.maximum(ref @ w + b, 0.0)

    # (1) fused single-kernel path, f32 MXU operands (tight check)
    prep_f32 = prepare_mlp_base_layer(params, compute_dtype=jnp.float32)
    out_fused = jax.block_until_ready(mlp_base_layer_forward(prep_f32, x))
    assert out_fused.shape == (batch, out_channels)
    assert jnp.allclose(out_fused, ref, atol=1e-4, rtol=1e-4)

    # (2) per-layer M/N/K-tiled fallback, f32 operands (tight check)
    out_tiled = jax.block_until_ready(
        mlp_base_layer_forward(prep_f32, x, force_tiled=True))
    assert out_tiled.shape == (batch, out_channels)
    assert jnp.allclose(out_tiled, ref, atol=1e-4, rtol=1e-4)

    # (3) default bf16 MXU operands (f32 accumulate + f32 epilogue), both paths
    prep_bf16 = prepare_mlp_base_layer(params)          # compute_dtype=bf16 default
    out_bf16_fused = jax.block_until_ready(mlp_base_layer_forward(prep_bf16, x))
    out_bf16_tiled = jax.block_until_ready(
        mlp_base_layer_forward(prep_bf16, x, force_tiled=True))
    assert out_bf16_fused.shape == (batch, out_channels)
    assert out_bf16_tiled.shape == (batch, out_channels)
    assert jnp.allclose(out_bf16_fused, ref, atol=1e-1, rtol=1e-1)
    assert jnp.allclose(out_bf16_tiled, ref, atol=1e-1, rtol=1e-1)

    # ---- config 2: asymmetric widths + small batch (single-tile grid) ------
    n_linear2 = 1
    batch2, in2, mid2, out2 = 64, 24, 200, 16           # pads: 128 / 256 / 128
    params2 = make_mlp_base_layer_params(k_params2, n_linear2, in2, mid2, out2)
    x2 = jax.random.normal(k_x2, (batch2, in2), jnp.float32)
    ref2 = x2
    for w, b in params2:
        ref2 = jnp.maximum(ref2 @ w + b, 0.0)
    prep2 = prepare_mlp_base_layer(params2, compute_dtype=jnp.float32)
    out2_fused = jax.block_until_ready(mlp_base_layer_forward(prep2, x2))
    assert out2_fused.shape == (batch2, out2)
    assert jnp.allclose(out2_fused, ref2, atol=1e-3, rtol=1e-3)

    print("KERNEL_OK")
</pallas_src>

<mosaic_0001>
module attributes {stable_mosaic.version = 11 : i64} {
  func.func @kernel(%arg0: i32, %arg1: memref<128x128xf32, #tpu.memory_space<vmem>>, %arg2: memref<128x128xf32, #tpu.memory_space<vmem>>, %arg3: memref<128x128xf32, #tpu.memory_space<vmem>>, %arg4: memref<128x128xf32, #tpu.memory_space<vmem>>, %arg5: memref<128x128xf32, #tpu.memory_space<vmem>>, %arg6: memref<1x128xf32, #tpu.memory_space<vmem>>, %arg7: memref<1x128xf32, #tpu.memory_space<vmem>>, %arg8: memref<1x128xf32, #tpu.memory_space<vmem>>, %arg9: memref<1x128xf32, #tpu.memory_space<vmem>>, %arg10: memref<128x128xf32, #tpu.memory_space<vmem>>) attributes {dimension_semantics = [#tpu.dimension_semantics<parallel>], iteration_bounds = array<i64: 2>, scalar_prefetch = 0 : i64, scratch_operands = 0 : i64, tpu.core_type = #tpu.core_type<tc>, window_params = [{transform_indices = @transform_0, window_bounds = array<i64: 128, 128>}, {pipeline_mode = #tpu.pipeline_mode<synchronous>, transform_indices = @transform_1, window_bounds = array<i64: 128, 128>}, {pipeline_mode = #tpu.pipeline_mode<synchronous>, transform_indices = @transform_2, window_bounds = array<i64: 128, 128>}, {pipeline_mode = #tpu.pipeline_mode<synchronous>, transform_indices = @transform_3, window_bounds = array<i64: 128, 128>}, {pipeline_mode = #tpu.pipeline_mode<synchronous>, transform_indices = @transform_4, window_bounds = array<i64: 128, 128>}, {pipeline_mode = #tpu.pipeline_mode<synchronous>, transform_indices = @transform_5, window_bounds = array<i64: 1, 128>}, {pipeline_mode = #tpu.pipeline_mode<synchronous>, transform_indices = @transform_6, window_bounds = array<i64: 1, 128>}, {pipeline_mode = #tpu.pipeline_mode<synchronous>, transform_indices = @transform_7, window_bounds = array<i64: 1, 128>}, {pipeline_mode = #tpu.pipeline_mode<synchronous>, transform_indices = @transform_8, window_bounds = array<i64: 1, 128>}, {transform_indices = @transform_9, window_bounds = array<i64: 128, 128>}]} {
    %c0 = arith.constant 0 : index
    %c0_0 = arith.constant 0 : index
    %0 = vector.load %arg1[%c0, %c0_0] : memref<128x128xf32, #tpu.memory_space<vmem>>, vector<128x128xf32>
    %c0_1 = arith.constant 0 : index
    %c0_2 = arith.constant 0 : index
    %1 = vector.load %arg2[%c0_1, %c0_2] : memref<128x128xf32, #tpu.memory_space<vmem>>, vector<128x128xf32>
    %cst = arith.constant dense<0.000000e+00> : vector<128x128xf32>
    %2 = tpu.matmul %0, %1, %cst {dimension_numbers = #tpu.dot_dimension_numbers<[1], [0], [0], [1], [0, 0, 1, 1], [], []>} : vector<128x128xf32>, vector<128x128xf32>, vector<128x128xf32> -> vector<128x128xf32>
    %c0_3 = arith.constant 0 : index
    %c0_4 = arith.constant 0 : index
    %3 = vector.load %arg6[%c0_3, %c0_4] : memref<1x128xf32, #tpu.memory_space<vmem>>, vector<1x128xf32>
    %4 = vector.broadcast %3 : vector<1x128xf32> to vector<128x128xf32>
    %5 = arith.addf %2, %4 : vector<128x128xf32>
    %cst_5 = arith.constant 0.000000e+00 : f32
    %6 = vector.broadcast %cst_5 : f32 to vector<128x128xf32>
    %7 = arith.maximumf %5, %6 : vector<128x128xf32>
    %c0_6 = arith.constant 0 : index
    %c0_7 = arith.constant 0 : index
    %8 = vector.load %arg3[%c0_6, %c0_7] : memref<128x128xf32, #tpu.memory_space<vmem>>, vector<128x128xf32>
    %cst_8 = arith.constant dense<0.000000e+00> : vector<128x128xf32>
    %9 = tpu.matmul %7, %8, %cst_8 {dimension_numbers = #tpu.dot_dimension_numbers<[1], [0], [0], [1], [0, 0, 1, 1], [], []>} : vector<128x128xf32>, vector<128x128xf32>, vector<128x128xf32> -> vector<128x128xf32>
    %c0_9 = arith.constant 0 : index
    %c0_10 = arith.constant 0 : index
    %10 = vector.load %arg7[%c0_9, %c0_10] : memref<1x128xf32, #tpu.memory_space<vmem>>, vector<1x128xf32>
    %11 = vector.broadcast %10 : vector<1x128xf32> to vector<128x128xf32>
    %12 = arith.addf %9, %11 : vector<128x128xf32>
    %cst_11 = arith.constant 0.000000e+00 : f32
    %13 = vector.broadcast %cst_11 : f32 to vector<128x128xf32>
    %14 = arith.maximumf %12, %13 : vector<128x128xf32>
    %c0_12 = arith.constant 0 : index
    %c0_13 = arith.constant 0 : index
    %15 = vector.load %arg4[%c0_12, %c0_13] : memref<128x128xf32, #tpu.memory_space<vmem>>, vector<128x128xf32>
    %cst_14 = arith.constant dense<0.000000e+00> : vector<128x128xf32>
    %16 = tpu.matmul %14, %15, %cst_14 {dimension_numbers = #tpu.dot_dimension_numbers<[1], [0], [0], [1], [0, 0, 1, 1], [], []>} : vector<128x128xf32>, vector<128x128xf32>, vector<128x128xf32> -> vector<128x128xf32>
    %c0_15 = arith.constant 0 : index
    %c0_16 = arith.constant 0 : index
    %17 = vector.load %arg8[%c0_15, %c0_16] : memref<1x128xf32, #tpu.memory_space<vmem>>, vector<1x128xf32>
    %18 = vector.broadcast %17 : vector<1x128xf32> to vector<128x128xf32>
    %19 = arith.addf %16, %18 : vector<128x128xf32>
    %cst_17 = arith.constant 0.000000e+00 : f32
    %20 = vector.broadcast %cst_17 : f32 to vector<128x128xf32>
    %21 = arith.maximumf %19, %20 : vector<128x128xf32>
    %c0_18 = arith.constant 0 : index
    %c0_19 = arith.constant 0 : index
    %22 = vector.load %arg5[%c0_18, %c0_19] : memref<128x128xf32, #tpu.memory_space<vmem>>, vector<128x128xf32>
    %cst_20 = arith.constant dense<0.000000e+00> : vector<128x128xf32>
    %23 = tpu.matmul %21, %22, %cst_20 {dimension_numbers = #tpu.dot_dimension_numbers<[1], [0], [0], [1], [0, 0, 1, 1], [], []>} : vector<128x128xf32>, vector<128x128xf32>, vector<128x128xf32> -> vector<128x128xf32>
    %c0_21 = arith.constant 0 : index
    %c0_22 = arith.constant 0 : index
    %24 = vector.load %arg9[%c0_21, %c0_22] : memref<1x128xf32, #tpu.memory_space<vmem>>, vector<1x128xf32>
    %25 = vector.broadcast %24 : vector<1x128xf32> to vector<128x128xf32>
    %26 = arith.addf %23, %25 : vector<128x128xf32>
    %cst_23 = arith.constant 0.000000e+00 : f32
    %27 = vector.broadcast %cst_23 : f32 to vector<128x128xf32>
    %28 = arith.maximumf %26, %27 : vector<128x128xf32>
    %c0_24 = arith.constant 0 : index
    %c0_25 = arith.constant 0 : index
    %29 = vector.load %arg10[%c0_24, %c0_25] : memref<128x128xf32, #tpu.memory_space<vmem>>, vector<128x128xf32>
    tpu.vector_store %arg10[%c0_24, %c0_25], %28 {strides = array<i32>} : memref<128x128xf32, #tpu.memory_space<vmem>>, vector<128x128xf32>,
    return
  }
  func.func @transform_0(%arg0: i32) -> (i32, i32) {
    %c0_i32 = arith.constant 0 : i32
    %c0_i32_0 = arith.constant 0 : i32
    return %arg0, %c0_i32 : i32, i32
  }
  func.func @transform_1(%arg0: i32) -> (i32, i32) {
    %c0_i32 = arith.constant 0 : i32
    %c0_i32_0 = arith.constant 0 : i32
    %c0_i32_1 = arith.constant 0 : i32
    return %c0_i32, %c0_i32_0 : i32, i32
  }
  func.func @transform_2(%arg0: i32) -> (i32, i32) {
    %c0_i32 = arith.constant 0 : i32
    %c0_i32_0 = arith.constant 0 : i32
    %c0_i32_1 = arith.constant 0 : i32
    return %c0_i32, %c0_i32_0 : i32, i32
  }
  func.func @transform_3(%arg0: i32) -> (i32, i32) {
    %c0_i32 = arith.constant 0 : i32
    %c0_i32_0 = arith.constant 0 : i32
    %c0_i32_1 = arith.constant 0 : i32
    return %c0_i32, %c0_i32_0 : i32, i32
  }
  func.func @transform_4(%arg0: i32) -> (i32, i32) {
    %c0_i32 = arith.constant 0 : i32
    %c0_i32_0 = arith.constant 0 : i32
    %c0_i32_1 = arith.constant 0 : i32
    return %c0_i32, %c0_i32_0 : i32, i32
  }
  func.func @transform_5(%arg0: i32) -> (i32, i32) {
    %c0_i32 = arith.constant 0 : i32
    %c0_i32_0 = arith.constant 0 : i32
    %c0_i32_1 = arith.constant 0 : i32
    return %c0_i32, %c0_i32_0 : i32, i32
  }
  func.func @transform_6(%arg0: i32) -> (i32, i32) {
    %c0_i32 = arith.constant 0 : i32
    %c0_i32_0 = arith.constant 0 : i32
    %c0_i32_1 = arith.constant 0 : i32
    return %c0_i32, %c0_i32_0 : i32, i32
  }
  func.func @transform_7(%arg0: i32) -> (i32, i32) {
    %c0_i32 = arith.constant 0 : i32
    %c0_i32_0 = arith.constant 0 : i32
    %c0_i32_1 = arith.constant 0 : i32
    return %c0_i32, %c0_i32_0 : i32, i32
  }
  func.func @transform_8(%arg0: i32) -> (i32, i32) {
    %c0_i32 = arith.constant 0 : i32
    %c0_i32_0 = arith.constant 0 : i32
    %c0_i32_1 = arith.constant 0 : i32
    return %c0_i32, %c0_i32_0 : i32, i32
  }
  func.func @transform_9(%arg0: i32) -> (i32, i32) {
    %c0_i32 = arith.constant 0 : i32
    %c0_i32_0 = arith.constant 0 : i32
    return %arg0, %c0_i32 : i32, i32
  }
}

</mosaic_0001>

<llo_original>
// kernel: tpu_custom_call.1
$region0: #{tpu_custom_call.1}
  #allocation0 [shape = 'u32[]', space=smem, size = 0x4, offset = 0x4, fixed_abs, tag = 'smem constant byte address 0x4 - core index']
  #allocation1 [shape = 'u32[144,128]{1,0:T(1,128)}', space=vmem, size = 0x12000, scoped, tag = 'internal scratch']
  %s0 = inlined_call_operand.hbm [shape: f32[256,128], index: 0, kind: input, shape index: {}]
  %s1 = inlined_call_operand.hbm [shape: f32[128,128], index: 1, kind: input, shape index: {}]
  %s2 = inlined_call_operand.hbm [shape: f32[128,128], index: 2, kind: input, shape index: {}]
  %s3 = inlined_call_operand.hbm [shape: f32[128,128], index: 3, kind: input, shape index: {}]
  %s4 = inlined_call_operand.hbm [shape: f32[128,128], index: 4, kind: input, shape index: {}]
  %s5 = inlined_call_operand.vmem [shape: f32[1,128], index: 5, kind: input, shape index: {}]
  %s6 = inlined_call_operand.vmem [shape: f32[1,128], index: 6, kind: input, shape index: {}]
  %s7 = inlined_call_operand.vmem [shape: f32[1,128], index: 7, kind: input, shape index: {}]
  %s8 = inlined_call_operand.vmem [shape: f32[1,128], index: 8, kind: input, shape index: {}]
  %s9 = inlined_call_operand.hbm [shape: f32[256,128], index: 9, kind: output, shape index: {}]
  %s10 = sld [smem:[#allocation0]]
  $region89: #{tpu_custom_call.1} parent=0
    _
  %s12 = ssub.s32 1, %s10
  %s13 = scalar_select 0, %s12, %s10
  $region1: #{tpu_custom_call.1} parent=0
    #allocation2 [shape = 'u8[131072]{0}', space=vmem, size = 0x20000, scoped, tag = 'input window, operand 0']
    #allocation3 [shape = 's32[2]{0}', space=sflag, size = 0x8, scoped, tag = 'scoped memory for tpu_custom_call.1']
    #allocation4 [shape = 's32[2]{0}', space=sflag, size = 0x8, scoped, tag = 'scoped memory for tpu_custom_call.1']
    #allocation5 [shape = 'u8[65536]{0}', space=vmem, size = 0x10000, scoped, tag = 'input window, operand 1, single buffered']
    #allocation6 [shape = 's32[1]{0}', space=sflag, size = 0x4, scoped, tag = 'scoped memory for tpu_custom_call.1']
    #allocation7 [shape = 'u8[65536]{0}', space=vmem, size = 0x10000, scoped, tag = 'input window, operand 2, single buffered']
    #allocation8 [shape = 'u8[65536]{0}', space=vmem, size = 0x10000, scoped, tag = 'input window, operand 3, single buffered']
    #allocation9 [shape = 's32[1]{0}', space=sflag, size = 0x4, scoped, tag = 'scoped memory for tpu_custom_call.1']
    #allocation10 [shape = 'u8[65536]{0}', space=vmem, size = 0x10000, scoped, tag = 'input window, operand 4, single buffered']
    #allocation11 [shape = 'u8[131072]{0}', space=vmem, size = 0x20000, scoped, tag = 'output window, operand 0']
    %14 = vsyncpa [#allocation3], 0
    %s15 = scalar_lea.sflag [#allocation3], 1
    %16 = vsyncpa %s15, 0
    %17 = vsyncpa [#allocation6], 0
    %18 = vsyncpa [#allocation9], 0
    %19 = vsyncpa [#allocation4], 0
    %s20 = scalar_lea.sflag [#allocation4], 1
    %21 = vsyncpa %s20, 0
    loop: start=0, step=1, limit=4
    $region2: #{tpu_custom_call.1} parent=1 // loop_pre_header
      _
    $region3: #{tpu_custom_call.1} parent=1 // loop_header
      %s23 = sphi 0, %s27
      %p24 = scmp.ge.s32.totalorder %s23, 4
      %s33 = sphi 0, %s35
      %s36 = sphi 0, %s33
      %s37 = sphi 0, %s36
      %s53 = sphi 0, %s37
      %s57 = sphi 0, %s57
      %s59 = sphi 0, %s57
      %s60 = sphi 0, %s59
      %s74 = sphi 0, %s60
      %s78 = sphi 0, %s78
      %s80 = sphi 0, %s78
      %s81 = sphi 0, %s80
      %s95 = sphi 0, %s81
      %s99 = sphi 0, %s99
      %s101 = sphi 0, %s99
      %s102 = sphi 0, %s101
      %s116 = sphi 0, %s102
      %s120 = sphi 0, %s120
      %s122 = sphi 0, %s120
      %s123 = sphi 0, %s122
      %s137 = sphi 0, %s123
      %s141 = sphi 0, %s141
      %s143 = sphi 0, %s141
      %s144 = sphi 0, %s143
      %s158 = sphi 0, %s144
      %s162 = sphi 0, %s162
      %s164 = sphi 0, %s162
      %s165 = sphi 0, %s164
      %s179 = sphi 0, %s165
      %s183 = sphi 0, %s183
      %s185 = sphi 0, %s183
      %s186 = sphi 0, %s185
      %s200 = sphi 0, %s186
      %s204 = sphi 0, %s204
      %s206 = sphi 0, %s204
      %s207 = sphi 0, %s206
      %s221 = sphi 0, %s207
      %s227 = sphi 0, %s229
      %s230 = sphi 0, %s227
      %s231 = sphi 0, %s230
      %s247 = sphi 0, %s231
    $region4: #{tpu_custom_call.1} parent=1 // loop_header_branch
      %26 = sbr.rel (%p24) target = $region8
    $region5: #{tpu_custom_call.1} parent=1 // loop_body
      %s28 = ssub.s32 %s23, 1
      %s29 = ssub.s32 %s23, 2
      %s30 = sadd.s32 %s23, 1
      %s31 = ssub.s32 %s23, %s30
      %p32 = scmp.eq.s32.totalorder %s31, 0
      %s34 = sadd.s32 %s33, 1
      %s35 = scalar_select %p32, %s33, %s34
      %p38 = pneg %p32
      %p39 = scmp.eq.s32.totalorder %s23, 1
      %p40 = por %p38, %p39
      %p41 = scmp.ne.s32.totalorder %s33, %s36
      %p42 = scmp.eq.s32.totalorder %s23, 0
      %p43 = por %p41, %p42
      %p44 = scmp.ne.s32.totalorder %s33, %s36
      %p45 = scmp.eq.s32.totalorder %s28, 1
      %p46 = por %p44, %p45
      %p47 = scmp.ne.s32.totalorder %s36, %s37
      %p48 = scmp.eq.s32.totalorder %s28, 0
      %p49 = por %p47, %p48
      %p50 = scmp.ne.s32.totalorder %s36, %s37
      %p51 = scmp.eq.s32.totalorder %s29, 1
      %p52 = por %p50, %p51
      %p54 = scmp.ne.s32.totalorder %s37, %s53
      %p55 = scmp.eq.s32.totalorder %s29, 0
      %p56 = por %p54, %p55
      %s58 = sadd.s32 %s57, 1
      %p61 = scmp.eq.s32.totalorder %s23, 1
      %p62 = scmp.ne.s32.totalorder %s57, %s59
      %p63 = scmp.eq.s32.totalorder %s23, 0
      %p64 = por %p62, %p63
      %p65 = scmp.ne.s32.totalorder %s57, %s59
      %p66 = scmp.eq.s32.totalorder %s28, 1
      %p67 = por %p65, %p66
      %p68 = scmp.ne.s32.totalorder %s59, %s60
      %p69 = scmp.eq.s32.totalorder %s28, 0
      %p70 = por %p68, %p69
      %p71 = scmp.ne.s32.totalorder %s59, %s60
      %p72 = scmp.eq.s32.totalorder %s29, 1
      %p73 = por %p71, %p72
      %p75 = scmp.ne.s32.totalorder %s60, %s74
      %p76 = scmp.eq.s32.totalorder %s29, 0
      %p77 = por %p75, %p76
      %s79 = sadd.s32 %s78, 1
      %p82 = scmp.eq.s32.totalorder %s23, 1
      %p83 = scmp.ne.s32.totalorder %s78, %s80
      %p84 = scmp.eq.s32.totalorder %s23, 0
      %p85 = por %p83, %p84
      %p86 = scmp.ne.s32.totalorder %s78, %s80
      %p87 = scmp.eq.s32.totalorder %s28, 1
      %p88 = por %p86, %p87
      %p89 = scmp.ne.s32.totalorder %s80, %s81
      %p90 = scmp.eq.s32.totalorder %s28, 0
      %p91 = por %p89, %p90
      %p92 = scmp.ne.s32.totalorder %s80, %s81
      %p93 = scmp.eq.s32.totalorder %s29, 1
      %p94 = por %p92, %p93
      %p96 = scmp.ne.s32.totalorder %s81, %s95
      %p97 = scmp.eq.s32.totalorder %s29, 0
      %p98 = por %p96, %p97
      %s100 = sadd.s32 %s99, 1
      %p103 = scmp.eq.s32.totalorder %s23, 1
      %p104 = scmp.ne.s32.totalorder %s99, %s101
      %p105 = scmp.eq.s32.totalorder %s23, 0
      %p106 = por %p104, %p105
      %p107 = scmp.ne.s32.totalorder %s99, %s101
      %p108 = scmp.eq.s32.totalorder %s28, 1
      %p109 = por %p107, %p108
      %p110 = scmp.ne.s32.totalorder %s101, %s102
      %p111 = scmp.eq.s32.totalorder %s28, 0
      %p112 = por %p110, %p111
      %p113 = scmp.ne.s32.totalorder %s101, %s102
      %p114 = scmp.eq.s32.totalorder %s29, 1
      %p115 = por %p113, %p114
      %p117 = scmp.ne.s32.totalorder %s102, %s116
      %p118 = scmp.eq.s32.totalorder %s29, 0
      %p119 = por %p117, %p118
      %s121 = sadd.s32 %s120, 1
      %p124 = scmp.eq.s32.totalorder %s23, 1
      %p125 = scmp.ne.s32.totalorder %s120, %s122
      %p126 = scmp.eq.s32.totalorder %s23, 0
      %p127 = por %p125, %p126
      %p128 = scmp.ne.s32.totalorder %s120, %s122
      %p129 = scmp.eq.s32.totalorder %s28, 1
      %p130 = por %p128, %p129
      %p131 = scmp.ne.s32.totalorder %s122, %s123
      %p132 = scmp.eq.s32.totalorder %s28, 0
      %p133 = por %p131, %p132
      %p134 = scmp.ne.s32.totalorder %s122, %s123
      %p135 = scmp.eq.s32.totalorder %s29, 1
      %p136 = por %p134, %p135
      %p138 = scmp.ne.s32.totalorder %s123, %s137
      %p139 = scmp.eq.s32.totalorder %s29, 0
      %p140 = por %p138, %p139
      %s142 = sadd.s32 %s141, 1
      %p145 = scmp.eq.s32.totalorder %s23, 1
      %p146 = scmp.ne.s32.totalorder %s141, %s143
      %p147 = scmp.eq.s32.totalorder %s23, 0
      %p148 = por %p146, %p147
      %p149 = scmp.ne.s32.totalorder %s141, %s143
      %p150 = scmp.eq.s32.totalorder %s28, 1
      %p151 = por %p149, %p150
      %p152 = scmp.ne.s32.totalorder %s143, %s144
      %p153 = scmp.eq.s32.totalorder %s28, 0
      %p154 = por %p152, %p153
      %p155 = scmp.ne.s32.totalorder %s143, %s144
      %p156 = scmp.eq.s32.totalorder %s29, 1
      %p157 = por %p155, %p156
      %p159 = scmp.ne.s32.totalorder %s144, %s158
      %p160 = scmp.eq.s32.totalorder %s29, 0
      %p161 = por %p159, %p160
      %s163 = sadd.s32 %s162, 1
      %p166 = scmp.eq.s32.totalorder %s23, 1
      %p167 = scmp.ne.s32.totalorder %s162, %s164
      %p168 = scmp.eq.s32.totalorder %s23, 0
      %p169 = por %p167, %p168
      %p170 = scmp.ne.s32.totalorder %s162, %s164
      %p171 = scmp.eq.s32.totalorder %s28, 1
      %p172 = por %p170, %p171
      %p173 = scmp.ne.s32.totalorder %s164, %s165
      %p174 = scmp.eq.s32.totalorder %s28, 0
      %p175 = por %p173, %p174
      %p176 = scmp.ne.s32.totalorder %s164, %s165
      %p177 = scmp.eq.s32.totalorder %s29, 1
      %p178 = por %p176, %p177
      %p180 = scmp.ne.s32.totalorder %s165, %s179
      %p181 = scmp.eq.s32.totalorder %s29, 0
      %p182 = por %p180, %p181
      %s184 = sadd.s32 %s183, 1
      %p187 = scmp.eq.s32.totalorder %s23, 1
      %p188 = scmp.ne.s32.totalorder %s183, %s185
      %p189 = scmp.eq.s32.totalorder %s23, 0
      %p190 = por %p188, %p189
      %p191 = scmp.ne.s32.totalorder %s183, %s185
      %p192 = scmp.eq.s32.totalorder %s28, 1
      %p193 = por %p191, %p192
      %p194 = scmp.ne.s32.totalorder %s185, %s186
      %p195 = scmp.eq.s32.totalorder %s28, 0
      %p196 = por %p194, %p195
      %p197 = scmp.ne.s32.totalorder %s185, %s186
      %p198 = scmp.eq.s32.totalorder %s29, 1
      %p199 = por %p197, %p198
      %p201 = scmp.ne.s32.totalorder %s186, %s200
      %p202 = scmp.eq.s32.totalorder %s29, 0
      %p203 = por %p201, %p202
      %s205 = sadd.s32 %s204, 1
      %p208 = scmp.eq.s32.totalorder %s23, 1
      %p209 = scmp.ne.s32.totalorder %s204, %s206
      %p210 = scmp.eq.s32.totalorder %s23, 0
      %p211 = por %p209, %p210
      %p212 = scmp.ne.s32.totalorder %s204, %s206
      %p213 = scmp.eq.s32.totalorder %s28, 1
      %p214 = por %p212, %p213
      %p215 = scmp.ne.s32.totalorder %s206, %s207
      %p216 = scmp.eq.s32.totalorder %s28, 0
      %p217 = por %p215, %p216
      %p218 = scmp.ne.s32.totalorder %s206, %s207
      %p219 = scmp.eq.s32.totalorder %s29, 1
      %p220 = por %p218, %p219
      %p222 = scmp.ne.s32.totalorder %s207, %s221
      %p223 = scmp.eq.s32.totalorder %s29, 0
      %p224 = por %p222, %p223
      %s225 = ssub.s32 %s23, %s30
      %p226 = scmp.eq.s32.totalorder %s225, 0
      %s228 = sadd.s32 %s227, 1
      %s229 = scalar_select %p226, %s227, %s228
      %p232 = pneg %p226
      %p233 = scmp.eq.s32.totalorder %s23, 1
      %p234 = por %p232, %p233
      %p235 = scmp.ne.s32.totalorder %s227, %s230
      %p236 = scmp.eq.s32.totalorder %s23, 0
      %p237 = por %p235, %p236
      %p238 = scmp.ne.s32.totalorder %s227, %s230
      %p239 = scmp.eq.s32.totalorder %s28, 1
      %p240 = por %p238, %p239
      %p241 = scmp.ne.s32.totalorder %s230, %s231
      %p242 = scmp.eq.s32.totalorder %s28, 0
      %p243 = por %p241, %p242
      %p244 = scmp.ne.s32.totalorder %s230, %s231
      %p245 = scmp.eq.s32.totalorder %s29, 1
      %p246 = por %p244, %p245
      %p248 = scmp.ne.s32.totalorder %s231, %s247
      %p249 = scmp.eq.s32.totalorder %s29, 0
      %p250 = por %p248, %p249
      %p251 = scmp.le.s32.totalorder 1, %s23
      %p252 = scmp.lt.s32.totalorder %s23, 3
      %p253 = pnand %p251, %p252
      %p254 = pneg %p253
      // Predicated region
      $region9: #{tpu_custom_call.1} parent=5 // pred_check
        _
      $region10: #{tpu_custom_call.1} parent=5 // pred_check_branch
        %256 = sbr.rel (%p253) target = $region12
      $region11: #{tpu_custom_call.1} parent=5 // pred_region
        %s257 = ssub.s32 %s23, 1
        // Predicated region
        $region13: #{tpu_custom_call.1} parent=11 // pred_check
          %p258 = pneg %p70
        $region14: #{tpu_custom_call.1} parent=11 // pred_check_branch
          %260 = sbr.rel (%p258) target = $region16
        $region15: #{tpu_custom_call.1} parent=11 // pred_region
          %s262 = ssub.s32 2048, 2048
          %263 = vsyncadd [#allocation6], %s262
          %s264 = sshll.u32 [#allocation5], 4
          %s265 = int_to_ptr.vmem [resolvable:$true] %s264
          %270 = dma.hbm_to_vmem [thread:$0]  %s1, 2048, %s265, [#allocation6], 128, 128, 8
        $region16: #{tpu_custom_call.1} parent=11 // pred_fallthru
          _
        // Predicated region
        $region17: #{tpu_custom_call.1} parent=11 // pred_check
          %p271 = pneg %p91
        $region18: #{tpu_custom_call.1} parent=11 // pred_check_branch
          %273 = sbr.rel (%p271) target = $region20
        $region19: #{tpu_custom_call.1} parent=11 // pred_region
          %s275 = ssub.s32 2048, 2048
          %276 = vsyncadd [#allocation6], %s275
          %s277 = sshll.u32 [#allocation7], 4
          %s278 = int_to_ptr.vmem [resolvable:$true] %s277
          %283 = dma.hbm_to_vmem [thread:$0]  %s2, 2048, %s278, [#allocation6], 128, 128, 8
        $region20: #{tpu_custom_call.1} parent=11 // pred_fallthru
          _
        // Predicated region
        $region21: #{tpu_custom_call.1} parent=11 // pred_check
          %p284 = pneg %p112
        $region22: #{tpu_custom_call.1} parent=11 // pred_check_branch
          %286 = sbr.rel (%p284) target = $region24
        $region23: #{tpu_custom_call.1} parent=11 // pred_region
          %s288 = ssub.s32 2048, 2048
          %289 = vsyncadd [#allocation9], %s288
          %s290 = sshll.u32 [#allocation8], 4
          %s291 = int_to_ptr.vmem [resolvable:$true] %s290
          %296 = dma.hbm_to_vmem [thread:$0]  %s3, 2048, %s291, [#allocation9], 128, 128, 8
        $region24: #{tpu_custom_call.1} parent=11 // pred_fallthru
          _
        // Predicated region
        $region25: #{tpu_custom_call.1} parent=11 // pred_check
          %p297 = pneg %p133
        $region26: #{tpu_custom_call.1} parent=11 // pred_check_branch
          %299 = sbr.rel (%p297) target = $region28
        $region27: #{tpu_custom_call.1} parent=11 // pred_region
          %s301 = ssub.s32 2048, 2048
          %302 = vsyncadd [#allocation9], %s301
          %s303 = sshll.u32 [#allocation10], 4
          %s304 = int_to_ptr.vmem [resolvable:$true] %s303
          %309 = dma.hbm_to_vmem [thread:$0]  %s4, 2048, %s304, [#allocation9], 128, 128, 8
        $region28: #{tpu_custom_call.1} parent=11 // pred_fallthru
          _
        // Predicated region
        $region29: #{tpu_custom_call.1} parent=11 // pred_check
          %p310 = pneg %p154
        $region30: #{tpu_custom_call.1} parent=11 // pred_check_branch
          %312 = sbr.rel (%p310) target = $region32
        $region31: #{tpu_custom_call.1} parent=11 // pred_region
          _
        $region32: #{tpu_custom_call.1} parent=11 // pred_fallthru
          _
        // Predicated region
        $region33: #{tpu_custom_call.1} parent=11 // pred_check
          %p313 = pneg %p175
        $region34: #{tpu_custom_call.1} parent=11 // pred_check_branch
          %315 = sbr.rel (%p313) target = $region36
        $region35: #{tpu_custom_call.1} parent=11 // pred_region
          _
        $region36: #{tpu_custom_call.1} parent=11 // pred_fallthru
          _
        // Predicated region
        $region37: #{tpu_custom_call.1} parent=11 // pred_check
          %p316 = pneg %p196
        $region38: #{tpu_custom_call.1} parent=11 // pred_check_branch
          %318 = sbr.rel (%p316) target = $region40
        $region39: #{tpu_custom_call.1} parent=11 // pred_region
          _
        $region40: #{tpu_custom_call.1} parent=11 // pred_fallthru
          _
        // Predicated region
        $region41: #{tpu_custom_call.1} parent=11 // pred_check
          %p319 = pneg %p217
        $region42: #{tpu_custom_call.1} parent=11 // pred_check_branch
          %321 = sbr.rel (%p319) target = $region44
        $region43: #{tpu_custom_call.1} parent=11 // pred_region
          _
        $region44: #{tpu_custom_call.1} parent=11 // pred_fallthru
          _
      $region12: #{tpu_custom_call.1} parent=5 // pred_fallthru
        _
      %p322 = scmp.lt.s32.totalorder %s23, 2
      // Predicated region
      $region45: #{tpu_custom_call.1} parent=5 // pred_check
        %p323 = pneg %p322
      $region46: #{tpu_custom_call.1} parent=5 // pred_check_branch
        %325 = sbr.rel (%p323) target = $region48
      $region47: #{tpu_custom_call.1} parent=5 // pred_region
        // Predicated region
        $region49: #{tpu_custom_call.1} parent=47 // pred_check
          %p326 = pneg %p43
        $region50: #{tpu_custom_call.1} parent=47 // pred_check_branch
          %328 = sbr.rel (%p326) target = $region52
        $region51: #{tpu_custom_call.1} parent=47 // pred_region
          %s329 = sand.u32 %s33, 1
          %s330 = scalar_lea.sflag [#allocation3], %s329
          %s331 = sand.u32 %s33, 1
          %s332 = smul.addr %s331, 128
          %s333 = scalar_lea.vmem [#allocation2], %s332
          %s334 = smul.u32 16, %s23
          %s336 = ssub.s32 2048, 2048
          %337 = vsyncadd %s330, %s336
          %s338 = smul.addr %s334, 128
          %s339 = scalar_lea.hbm %s0, %s338
          %s340 = sshll.u32 %s333, 4
          %s341 = int_to_ptr.vmem [resolvable:$true] %s340
          %346 = dma.hbm_to_vmem [thread:$0]  %s339, 2048, %s341, %s330, 128, 128, 8
        $region52: #{tpu_custom_call.1} parent=47 // pred_fallthru
          _
      $region48: #{tpu_custom_call.1} parent=5 // pred_fallthru
        _
      %p347 = scmp.le.s32.totalorder 1, %s23
      %p348 = scmp.lt.s32.totalorder %s23, 3
      %p349 = pnand %p347, %p348
      %p350 = pneg %p349
      // Predicated region
      $region53: #{tpu_custom_call.1} parent=5 // pred_check
        _
      $region54: #{tpu_custom_call.1} parent=5 // pred_check_branch
        %352 = sbr.rel (%p349) target = $region56
      $region55: #{tpu_custom_call.1} parent=5 // pred_region
        %s353 = ssub.s32 %s23, 1
        %s354 = sand.u32 %s36, 1
        %s355 = scalar_lea.sflag [#allocation3], %s354
        %s356 = sand.u32 %s36, 1
        %s357 = smul.addr %s356, 128
        %s358 = scalar_lea.vmem [#allocation2], %s357
        // Predicated region
        $region57: #{tpu_custom_call.1} parent=55 // pred_check
          %p359 = pneg %p49
        $region58: #{tpu_custom_call.1} parent=55 // pred_check_branch
          %361 = sbr.rel (%p359) target = $region60
        $region59: #{tpu_custom_call.1} parent=55 // pred_region
          %362 = dma.done %s355, 2048
        $region60: #{tpu_custom_call.1} parent=55 // pred_fallthru
          _
        // Predicated region
        $region61: #{tpu_custom_call.1} parent=55 // pred_check
          %p363 = pneg %p70
        $region62: #{tpu_custom_call.1} parent=55 // pred_check_branch
          %365 = sbr.rel (%p363) target = $region64
        $region63: #{tpu_custom_call.1} parent=55 // pred_region
          %366 = dma.done [#allocation6], 2048
        $region64: #{tpu_custom_call.1} parent=55 // pred_fallthru
          _
        // Predicated region
        $region65: #{tpu_custom_call.1} parent=55 // pred_check
          %p367 = pneg %p91
        $region66: #{tpu_custom_call.1} parent=55 // pred_check_branch
          %369 = sbr.rel (%p367) target = $region68
        $region67: #{tpu_custom_call.1} parent=55 // pred_region
          %370 = dma.done [#allocation6], 2048
        $region68: #{tpu_custom_call.1} parent=55 // pred_fallthru
          _
        // Predicated region
        $region69: #{tpu_custom_call.1} parent=55 // pred_check
          %p371 = pneg %p112
        $region70: #{tpu_custom_call.1} parent=55 // pred_check_branch
          %373 = sbr.rel (%p371) target = $region72
        $region71: #{tpu_custom_call.1} parent=55 // pred_region
          %374 = dma.done [#allocation9], 2048
        $region72: #{tpu_custom_call.1} parent=55 // pred_fallthru
          _
        // Predicated region
        $region73: #{tpu_custom_call.1} parent=55 // pred_check
          %p375 = pneg %p133
        $region74: #{tpu_custom_call.1} parent=55 // pred_check_branch
          %377 = sbr.rel (%p375) target = $region76
        $region75: #{tpu_custom_call.1} parent=55 // pred_region
          %378 = dma.done [#allocation9], 2048
        $region76: #{tpu_custom_call.1} parent=55 // pred_fallthru
          _
        %s379 = sand.u32 %s36, 1
        %s380 = scalar_lea.sflag [#allocation3], %s379
        %s381 = sand.u32 %s36, 1
        %s382 = smul.addr %s381, 128
        %s383 = scalar_lea.vmem [#allocation2], %s382
        %p384 = pneg %p49
        %p385 = pneg %p46
        %p386 = pneg %p70
        %p387 = pneg %p67
        %p388 = pneg %p91
        %p389 = pneg %p88
        %p390 = pneg %p112
        %p391 = pneg %p109
        %p392 = pneg %p133
        %p393 = pneg %p130
        %p394 = pneg %p154
        %p395 = pneg %p151
        %p396 = pneg %p175
        %p397 = pneg %p172
        %p398 = pneg %p196
        %p399 = pneg %p193
        %p400 = pneg %p217
        %p401 = pneg %p214
        %p402 = pneg %p243
        %p403 = pneg %p240
        %s404 = sand.u32 %s230, 1
        %s405 = scalar_lea.sflag [#allocation4], %s404
        %s406 = sand.u32 %s230, 1
        %s407 = smul.addr %s406, 128
        %s408 = scalar_lea.vmem [#allocation11], %s407
        %s409 = smul.u32 16, %s28
        %s410 = smul.u32 16, %s28
        %v411 = vld [vmem:[%s358] sm:$0xff]
        %v412 = vld [vmem:[%s358 + $0x8] sm:$0xff]
        %v413 = vld [vmem:[%s358 + $0x10] sm:$0xff]
        %v414 = vld [vmem:[%s358 + $0x18] sm:$0xff]
        %v415 = vld [vmem:[%s358 + $0x20] sm:$0xff]
        %v416 = vld [vmem:[%s358 + $0x28] sm:$0xff]
        %v417 = vld [vmem:[%s358 + $0x30] sm:$0xff]
        %v418 = vld [vmem:[%s358 + $0x38] sm:$0xff]
        %v419 = vld [vmem:[%s358 + $0x40] sm:$0xff]
        %v420 = vld [vmem:[%s358 + $0x48] sm:$0xff]
        %v421 = vld [vmem:[%s358 + $0x50] sm:$0xff]
        %v422 = vld [vmem:[%s358 + $0x58] sm:$0xff]
        %v423 = vld [vmem:[%s358 + $0x60] sm:$0xff]
        %v424 = vld [vmem:[%s358 + $0x68] sm:$0xff]
        %v425 = vld [vmem:[%s358 + $0x70] sm:$0xff]
        %v426 = vld [vmem:[%s358 + $0x78] sm:$0xff]
        %v427 = vld [vmem:[#allocation5] sm:$0xff]
        %v428 = vld [vmem:[#allocation5 + $0x8] sm:$0xff]
        %v429 = vld [vmem:[#allocation5 + $0x10] sm:$0xff]
        %v430 = vld [vmem:[#allocation5 + $0x18] sm:$0xff]
        %v431 = vld [vmem:[#allocation5 + $0x20] sm:$0xff]
        %v432 = vld [vmem:[#allocation5 + $0x28] sm:$0xff]
        %v433 = vld [vmem:[#allocation5 + $0x30] sm:$0xff]
        %v434 = vld [vmem:[#allocation5 + $0x38] sm:$0xff]
        %v435 = vld [vmem:[#allocation5 + $0x40] sm:$0xff]
        %v436 = vld [vmem:[#allocation5 + $0x48] sm:$0xff]
        %v437 = vld [vmem:[#allocation5 + $0x50] sm:$0xff]
        %v438 = vld [vmem:[#allocation5 + $0x58] sm:$0xff]
        %v439 = vld [vmem:[#allocation5 + $0x60] sm:$0xff]
        %v440 = vld [vmem:[#allocation5 + $0x68] sm:$0xff]
        %v441 = vld [vmem:[#allocation5 + $0x70] sm:$0xff]
        %v442 = vld [vmem:[#allocation5 + $0x78] sm:$0xff]
        %v443 = vld [vmem:[%s5] sm:$0x1]
        %v445 = vlaneseq
        %v446 = vshrl.u32 %v445, 7
        %v447 = vsub.s32 0, %v446
        %v448 = vrot.slane %v443, %v447
        %450 = vmatprep.subr.mxu0 0.0
        %451 = vmatpush1.msra.mxu0 %v442
        %452 = vmatprep.subr.mxu0 0.0
        %453 = vmatpush1.msra.mxu0 %v441
        %454 = vmatprep.subr.mxu0 0.0
        %455 = vmatpush1.msra.mxu0 %v440
        %456 = vmatprep.subr.mxu0 0.0
        %457 = vmatpush1.msra.mxu0 %v439
        %458 = vmatprep.subr.mxu0 0.0
        %459 = vmatpush1.msra.mxu0 %v438
        %460 = vmatprep.subr.mxu0 0.0
        %461 = vmatpush1.msra.mxu0 %v437
        %462 = vmatprep.subr.mxu0 0.0
        %463 = vmatpush1.msra.mxu0 %v436
        %464 = vmatprep.subr.mxu0 0.0
        %465 = vmatpush1.msra.mxu0 %v435
        %466 = vmatprep.subr.mxu0 0.0
        %467 = vmatpush1.msra.mxu0 %v434
        %468 = vmatprep.subr.mxu0 0.0
        %469 = vmatpush1.msra.mxu0 %v433
        %470 = vmatprep.subr.mxu0 0.0
        %471 = vmatpush1.msra.mxu0 %v432
        %472 = vmatprep.subr.mxu0 0.0
        %473 = vmatpush1.msra.mxu0 %v431
        %474 = vmatprep.subr.mxu0 0.0
        %475 = vmatpush1.msra.mxu0 %v430
        %476 = vmatprep.subr.mxu0 0.0
        %477 = vmatpush1.msra.mxu0 %v429
        %478 = vmatprep.subr.mxu0 0.0
        %479 = vmatpush1.msra.mxu0 %v428
        %480 = vmatprep.subr.mxu0 0.0
        %481 = vmatpush1.msra.mxu0 %v427
        %482 = vmatprep.subr.mxu0 0.0
        %483 = vmatpush2.msra.mxu0 0.0
        %484 = vmatprep.subr.mxu0 0.0
        %485 = vmatpush2.msra.mxu0 0.0
        %486 = vmatprep.subr.mxu0 0.0
        %487 = vmatpush2.msra.mxu0 0.0
        %488 = vmatprep.subr.mxu0 0.0
        %489 = vmatpush2.msra.mxu0 0.0
        %490 = vmatprep.subr.mxu0 0.0
        %491 = vmatpush2.msra.mxu0 0.0
        %492 = vmatprep.subr.mxu0 0.0
        %493 = vmatpush2.msra.mxu0 0.0
        %494 = vmatprep.subr.mxu0 0.0
        %495 = vmatpush2.msra.mxu0 0.0
        %496 = vmatprep.subr.mxu0 0.0
        %497 = vmatpush2.msra.mxu0 0.0
        %498 = vmatprep.subr.mxu0 0.0
        %499 = vmatpush2.msra.mxu0 0.0
        %500 = vmatprep.subr.mxu0 0.0
        %501 = vmatpush2.msra.mxu0 0.0
        %502 = vmatprep.subr.mxu0 0.0
        %503 = vmatpush2.msra.mxu0 0.0
        %504 = vmatprep.subr.mxu0 0.0
        %505 = vmatpush2.msra.mxu0 0.0
        %506 = vmatprep.subr.mxu0 0.0
        %507 = vmatpush2.msra.mxu0 0.0
        %508 = vmatprep.subr.mxu0 0.0
        %509 = vmatpush2.msra.mxu0 0.0
        %510 = vmatprep.subr.mxu0 0.0
        %511 = vmatpush2.msra.mxu0 0.0
        %512 = vmatprep.subr.mxu0 0.0
        %513 = vmatpush2.msra.mxu0 0.0
        %514 = vmatprep.mubr.f32.mxu0 0.0
        %515 = vmatmul.mubr.f32.gmra.mxu0 %v411
        %v516 = vpop.f32.mrf.mxu0
        %v517 = vadd.f32 %v448, %v516
        %v518 = vpop.f32.mrf.mxu0
        %519 = vmatprep.mubr.f32.mxu0 0.0
        %520 = vmatmul.mubr.f32.gmra.mxu0 %v412
        %v521 = vpop.f32.mrf.mxu0
        %v522 = vadd.f32 %v448, %v521
        %v523 = vpop.f32.mrf.mxu0
        %524 = vmatprep.mubr.f32.mxu0 0.0
        %525 = vmatmul.mubr.f32.gmra.mxu0 %v413
        %v526 = vpop.f32.mrf.mxu0
        %v527 = vadd.f32 %v448, %v526
        %v528 = vpop.f32.mrf.mxu0
        %529 = vmatprep.mubr.f32.mxu0 0.0
        %530 = vmatmul.mubr.f32.gmra.mxu0 %v414
        %v531 = vpop.f32.mrf.mxu0
        %v532 = vadd.f32 %v448, %v531
        %v533 = vpop.f32.mrf.mxu0
        %534 = vmatprep.mubr.f32.mxu0 0.0
        %535 = vmatmul.mubr.f32.gmra.mxu0 %v415
        %v536 = vpop.f32.mrf.mxu0
        %v537 = vadd.f32 %v448, %v536
        %v538 = vpop.f32.mrf.mxu0
        %539 = vmatprep.mubr.f32.mxu0 0.0
        %540 = vmatmul.mubr.f32.gmra.mxu0 %v416
        %v541 = vpop.f32.mrf.mxu0
        %v542 = vadd.f32 %v448, %v541
        %v543 = vpop.f32.mrf.mxu0
        %544 = vmatprep.mubr.f32.mxu0 0.0
        %545 = vmatmul.mubr.f32.gmra.mxu0 %v417
        %v546 = vpop.f32.mrf.mxu0
        %v547 = vadd.f32 %v448, %v546
        %v548 = vpop.f32.mrf.mxu0
        %549 = vmatprep.mubr.f32.mxu0 0.0
        %550 = vmatmul.mubr.f32.gmra.mxu0 %v418
        %v551 = vpop.f32.mrf.mxu0
        %v552 = vadd.f32 %v448, %v551
        %v553 = vpop.f32.mrf.mxu0
        %554 = vmatprep.mubr.f32.mxu0 0.0
        %555 = vmatmul.mubr.f32.gmra.mxu0 %v419
        %v556 = vpop.f32.mrf.mxu0
        %v557 = vadd.f32 %v448, %v556
        %v558 = vpop.f32.mrf.mxu0
        %559 = vmatprep.mubr.f32.mxu0 0.0
        %560 = vmatmul.mubr.f32.gmra.mxu0 %v420
        %v561 = vpop.f32.mrf.mxu0
        %v562 = vadd.f32 %v448, %v561
        %v563 = vpop.f32.mrf.mxu0
        %564 = vmatprep.mubr.f32.mxu0 0.0
        %565 = vmatmul.mubr.f32.gmra.mxu0 %v421
        %v566 = vpop.f32.mrf.mxu0
        %v567 = vadd.f32 %v448, %v566
        %v568 = vpop.f32.mrf.mxu0
        %569 = vmatprep.mubr.f32.mxu0 0.0
        %570 = vmatmul.mubr.f32.gmra.mxu0 %v422
        %v571 = vpop.f32.mrf.mxu0
        %v572 = vadd.f32 %v448, %v571
        %v573 = vpop.f32.mrf.mxu0
        %574 = vmatprep.mubr.f32.mxu0 0.0
        %575 = vmatmul.mubr.f32.gmra.mxu0 %v423
        %v576 = vpop.f32.mrf.mxu0
        %v577 = vadd.f32 %v448, %v576
        %v578 = vpop.f32.mrf.mxu0
        %579 = vmatprep.mubr.f32.mxu0 0.0
        %580 = vmatmul.mubr.f32.gmra.mxu0 %v424
        %v581 = vpop.f32.mrf.mxu0
        %v582 = vadd.f32 %v448, %v581
        %v583 = vpop.f32.mrf.mxu0
        %584 = vmatprep.mubr.f32.mxu0 0.0
        %585 = vmatmul.mubr.f32.gmra.mxu0 %v425
        %v586 = vpop.f32.mrf.mxu0
        %v587 = vadd.f32 %v448, %v586
        %v588 = vpop.f32.mrf.mxu0
        %589 = vmatprep.mubr.f32.mxu0 0.0
        %590 = vmatmul.mubr.f32.gmra.mxu0 %v426
        %v591 = vpop.f32.mrf.mxu0
        %v592 = vadd.f32 %v448, %v591
        %v593 = vpop.f32.mrf.mxu0
        %594 = vdwg.mxu0
        %v595 = vmax.f32 %v517, 0.0
        %v596 = vmax.f32 %v522, 0.0
        %v597 = vmax.f32 %v527, 0.0
        %v598 = vmax.f32 %v532, 0.0
        %v599 = vmax.f32 %v537, 0.0
        %v600 = vmax.f32 %v542, 0.0
        %v601 = vmax.f32 %v547, 0.0
        %v602 = vmax.f32 %v552, 0.0
        %v603 = vmax.f32 %v557, 0.0
        %v604 = vmax.f32 %v562, 0.0
        %v605 = vmax.f32 %v567, 0.0
        %v606 = vmax.f32 %v572, 0.0
        %v607 = vmax.f32 %v577, 0.0
        %v608 = vmax.f32 %v582, 0.0
        %v609 = vmax.f32 %v587, 0.0
        %v610 = vmax.f32 %v592, 0.0
        %v611 = vld [vmem:[#allocation7] sm:$0xff]
        %v612 = vld [vmem:[#allocation7 + $0x8] sm:$0xff]
        %v613 = vld [vmem:[#allocation7 + $0x10] sm:$0xff]
        %v614 = vld [vmem:[#allocation7 + $0x18] sm:$0xff]
        %v615 = vld [vmem:[#allocation7 + $0x20] sm:$0xff]
        %v616 = vld [vmem:[#allocation7 + $0x28] sm:$0xff]
        %v617 = vld [vmem:[#allocation7 + $0x30] sm:$0xff]
        %v618 = vld [vmem:[#allocation7 + $0x38] sm:$0xff]
        %v619 = vld [vmem:[#allocation7 + $0x40] sm:$0xff]
        %v620 = vld [vmem:[#allocation7 + $0x48] sm:$0xff]
        %v621 = vld [vmem:[#allocation7 + $0x50] sm:$0xff]
        %v622 = vld [vmem:[#allocation7 + $0x58] sm:$0xff]
        %v623 = vld [vmem:[#allocation7 + $0x60] sm:$0xff]
        %v624 = vld [vmem:[#allocation7 + $0x68] sm:$0xff]
        %v625 = vld [vmem:[#allocation7 + $0x70] sm:$0xff]
        %v626 = vld [vmem:[#allocation7 + $0x78] sm:$0xff]
        %v627 = vld [vmem:[%s6] sm:$0x1]
        %v629 = vlaneseq
        %v630 = vshrl.u32 %v629, 7
        %v631 = vsub.s32 0, %v630
        %v632 = vrot.slane %v627, %v631
        %634 = vmatprep.subr.mxu0 0.0
        %635 = vmatpush1.msra.mxu0 %v626
        %636 = vmatprep.subr.mxu0 0.0
        %637 = vmatpush1.msra.mxu0 %v625
        %638 = vmatprep.subr.mxu0 0.0
        %639 = vmatpush1.msra.mxu0 %v624
        %640 = vmatprep.subr.mxu0 0.0
        %641 = vmatpush1.msra.mxu0 %v623
        %642 = vmatprep.subr.mxu0 0.0
        %643 = vmatpush1.msra.mxu0 %v622
        %644 = vmatprep.subr.mxu0 0.0
        %645 = vmatpush1.msra.mxu0 %v621
        %646 = vmatprep.subr.mxu0 0.0
        %647 = vmatpush1.msra.mxu0 %v620
        %648 = vmatprep.subr.mxu0 0.0
        %649 = vmatpush1.msra.mxu0 %v619
        %650 = vmatprep.subr.mxu0 0.0
        %651 = vmatpush1.msra.mxu0 %v618
        %652 = vmatprep.subr.mxu0 0.0
        %653 = vmatpush1.msra.mxu0 %v617
        %654 = vmatprep.subr.mxu0 0.0
        %655 = vmatpush1.msra.mxu0 %v616
        %656 = vmatprep.subr.mxu0 0.0
        %657 = vmatpush1.msra.mxu0 %v615
        %658 = vmatprep.subr.mxu0 0.0
        %659 = vmatpush1.msra.mxu0 %v614
        %660 = vmatprep.subr.mxu0 0.0
        %661 = vmatpush1.msra.mxu0 %v613
        %662 = vmatprep.subr.mxu0 0.0
        %663 = vmatpush1.msra.mxu0 %v612
        %664 = vmatprep.subr.mxu0 0.0
        %665 = vmatpush1.msra.mxu0 %v611
        %666 = vmatprep.subr.mxu0 0.0
        %667 = vmatpush2.msra.mxu0 0.0
        %668 = vmatprep.subr.mxu0 0.0
        %669 = vmatpush2.msra.mxu0 0.0
        %670 = vmatprep.subr.mxu0 0.0
        %671 = vmatpush2.msra.mxu0 0.0
        %672 = vmatprep.subr.mxu0 0.0
        %673 = vmatpush2.msra.mxu0 0.0
        %674 = vmatprep.subr.mxu0 0.0
        %675 = vmatpush2.msra.mxu0 0.0
        %676 = vmatprep.subr.mxu0 0.0
        %677 = vmatpush2.msra.mxu0 0.0
        %678 = vmatprep.subr.mxu0 0.0
        %679 = vmatpush2.msra.mxu0 0.0
        %680 = vmatprep.subr.mxu0 0.0
        %681 = vmatpush2.msra.mxu0 0.0
        %682 = vmatprep.subr.mxu0 0.0
        %683 = vmatpush2.msra.mxu0 0.0
        %684 = vmatprep.subr.mxu0 0.0
        %685 = vmatpush2.msra.mxu0 0.0
        %686 = vmatprep.subr.mxu0 0.0
        %687 = vmatpush2.msra.mxu0 0.0
        %688 = vmatprep.subr.mxu0 0.0
        %689 = vmatpush2.msra.mxu0 0.0
        %690 = vmatprep.subr.mxu0 0.0
        %691 = vmatpush2.msra.mxu0 0.0
        %692 = vmatprep.subr.mxu0 0.0
        %693 = vmatpush2.msra.mxu0 0.0
        %694 = vmatprep.subr.mxu0 0.0
        %695 = vmatpush2.msra.mxu0 0.0
        %696 = vmatprep.subr.mxu0 0.0
        %697 = vmatpush2.msra.mxu0 0.0
        %698 = vmatprep.mubr.f32.mxu0 0.0
        %699 = vmatmul.mubr.f32.gmra.mxu0 %v595
        %v700 = vpop.f32.mrf.mxu0
        %v701 = vadd.f32 %v632, %v700
        %v702 = vpop.f32.mrf.mxu0
        %703 = vmatprep.mubr.f32.mxu0 0.0
        %704 = vmatmul.mubr.f32.gmra.mxu0 %v596
        %v705 = vpop.f32.mrf.mxu0
        %v706 = vadd.f32 %v632, %v705
        %v707 = vpop.f32.mrf.mxu0
        %708 = vmatprep.mubr.f32.mxu0 0.0
        %709 = vmatmul.mubr.f32.gmra.mxu0 %v597
        %v710 = vpop.f32.mrf.mxu0
        %v711 = vadd.f32 %v632, %v710
        %v712 = vpop.f32.mrf.mxu0
        %713 = vmatprep.mubr.f32.mxu0 0.0
        %714 = vmatmul.mubr.f32.gmra.mxu0 %v598
        %v715 = vpop.f32.mrf.mxu0
        %v716 = vadd.f32 %v632, %v715
        %v717 = vpop.f32.mrf.mxu0
        %718 = vmatprep.mubr.f32.mxu0 0.0
        %719 = vmatmul.mubr.f32.gmra.mxu0 %v599
        %v720 = vpop.f32.mrf.mxu0
        %v721 = vadd.f32 %v632, %v720
        %v722 = vpop.f32.mrf.mxu0
        %723 = vmatprep.mubr.f32.mxu0 0.0
        %724 = vmatmul.mubr.f32.gmra.mxu0 %v600
        %v725 = vpop.f32.mrf.mxu0
        %v726 = vadd.f32 %v632, %v725
        %v727 = vpop.f32.mrf.mxu0
        %728 = vmatprep.mubr.f32.mxu0 0.0
        %729 = vmatmul.mubr.f32.gmra.mxu0 %v601
        %v730 = vpop.f32.mrf.mxu0
        %v731 = vadd.f32 %v632, %v730
        %v732 = vpop.f32.mrf.mxu0
        %733 = vmatprep.mubr.f32.mxu0 0.0
        %734 = vmatmul.mubr.f32.gmra.mxu0 %v602
        %v735 = vpop.f32.mrf.mxu0
        %v736 = vadd.f32 %v632, %v735
        %v737 = vpop.f32.mrf.mxu0
        %738 = vmatprep.mubr.f32.mxu0 0.0
        %739 = vmatmul.mubr.f32.gmra.mxu0 %v603
        %v740 = vpop.f32.mrf.mxu0
        %v741 = vadd.f32 %v632, %v740
        %v742 = vpop.f32.mrf.mxu0
        %743 = vmatprep.mubr.f32.mxu0 0.0
        %744 = vmatmul.mubr.f32.gmra.mxu0 %v604
        %v745 = vpop.f32.mrf.mxu0
        %v746 = vadd.f32 %v632, %v745
        %v747 = vpop.f32.mrf.mxu0
        %748 = vmatprep.mubr.f32.mxu0 0.0
        %749 = vmatmul.mubr.f32.gmra.mxu0 %v605
        %v750 = vpop.f32.mrf.mxu0
        %v751 = vadd.f32 %v632, %v750
        %v752 = vpop.f32.mrf.mxu0
        %753 = vmatprep.mubr.f32.mxu0 0.0
        %754 = vmatmul.mubr.f32.gmra.mxu0 %v606
        %v755 = vpop.f32.mrf.mxu0
        %v756 = vadd.f32 %v632, %v755
        %v757 = vpop.f32.mrf.mxu0
        %758 = vmatprep.mubr.f32.mxu0 0.0
        %759 = vmatmul.mubr.f32.gmra.mxu0 %v607
        %v760 = vpop.f32.mrf.mxu0
        %v761 = vadd.f32 %v632, %v760
        %v762 = vpop.f32.mrf.mxu0
        %763 = vmatprep.mubr.f32.mxu0 0.0
        %764 = vmatmul.mubr.f32.gmra.mxu0 %v608
        %v765 = vpop.f32.mrf.mxu0
        %v766 = vadd.f32 %v632, %v765
        %v767 = vpop.f32.mrf.mxu0
        %768 = vmatprep.mubr.f32.mxu0 0.0
        %769 = vmatmul.mubr.f32.gmra.mxu0 %v609
        %v770 = vpop.f32.mrf.mxu0
        %v771 = vadd.f32 %v632, %v770
        %v772 = vpop.f32.mrf.mxu0
        %773 = vmatprep.mubr.f32.mxu0 0.0
        %774 = vmatmul.mubr.f32.gmra.mxu0 %v610
        %v775 = vpop.f32.mrf.mxu0
        %v776 = vadd.f32 %v632, %v775
        %v777 = vpop.f32.mrf.mxu0
        %778 = vdwg.mxu0
        %v779 = vmax.f32 %v701, 0.0
        %v780 = vmax.f32 %v706, 0.0
        %v781 = vmax.f32 %v711, 0.0
        %v782 = vmax.f32 %v716, 0.0
        %v783 = vmax.f32 %v721, 0.0
        %v784 = vmax.f32 %v726, 0.0
        %v785 = vmax.f32 %v731, 0.0
        %v786 = vmax.f32 %v736, 0.0
        %v787 = vmax.f32 %v741, 0.0
        %v788 = vmax.f32 %v746, 0.0
        %v789 = vmax.f32 %v751, 0.0
        %v790 = vmax.f32 %v756, 0.0
        %v791 = vmax.f32 %v761, 0.0
        %v792 = vmax.f32 %v766, 0.0
        %v793 = vmax.f32 %v771, 0.0
        %v794 = vmax.f32 %v776, 0.0
        %v795 = vld [vmem:[#allocation8] sm:$0xff]
        %v796 = vld [vmem:[#allocation8 + $0x8] sm:$0xff]
        %v797 = vld [vmem:[#allocation8 + $0x10] sm:$0xff]
        %v798 = vld [vmem:[#allocation8 + $0x18] sm:$0xff]
        %v799 = vld [vmem:[#allocation8 + $0x20] sm:$0xff]
        %v800 = vld [vmem:[#allocation8 + $0x28] sm:$0xff]
        %v801 = vld [vmem:[#allocation8 + $0x30] sm:$0xff]
        %v802 = vld [vmem:[#allocation8 + $0x38] sm:$0xff]
        %v803 = vld [vmem:[#allocation8 + $0x40] sm:$0xff]
        %v804 = vld [vmem:[#allocation8 + $0x48] sm:$0xff]
        %v805 = vld [vmem:[#allocation8 + $0x50] sm:$0xff]
        %v806 = vld [vmem:[#allocation8 + $0x58] sm:$0xff]
        %v807 = vld [vmem:[#allocation8 + $0x60] sm:$0xff]
        %v808 = vld [vmem:[#allocation8 + $0x68] sm:$0xff]
        %v809 = vld [vmem:[#allocation8 + $0x70] sm:$0xff]
        %v810 = vld [vmem:[#allocation8 + $0x78] sm:$0xff]
        %v811 = vld [vmem:[%s7] sm:$0x1]
        %v813 = vlaneseq
        %v814 = vshrl.u32 %v813, 7
        %v815 = vsub.s32 0, %v814
        %v816 = vrot.slane %v811, %v815
        %818 = vmatprep.subr.mxu0 0.0
        %819 = vmatpush1.msra.mxu0 %v810
        %820 = vmatprep.subr.mxu0 0.0
        %821 = vmatpush1.msra.mxu0 %v809
        %822 = vmatprep.subr.mxu0 0.0
        %823 = vmatpush1.msra.mxu0 %v808
        %824 = vmatprep.subr.mxu0 0.0
        %825 = vmatpush1.msra.mxu0 %v807
        %826 = vmatprep.subr.mxu0 0.0
        %827 = vmatpush1.msra.mxu0 %v806
        %828 = vmatprep.subr.mxu0 0.0
        %829 = vmatpush1.msra.mxu0 %v805
        %830 = vmatprep.subr.mxu0 0.0
        %831 = vmatpush1.msra.mxu0 %v804
        %832 = vmatprep.subr.mxu0 0.0
        %833 = vmatpush1.msra.mxu0 %v803
        %834 = vmatprep.subr.mxu0 0.0
        %835 = vmatpush1.msra.mxu0 %v802
        %836 = vmatprep.subr.mxu0 0.0
        %837 = vmatpush1.msra.mxu0 %v801
        %838 = vmatprep.subr.mxu0 0.0
        %839 = vmatpush1.msra.mxu0 %v800
        %840 = vmatprep.subr.mxu0 0.0
        %841 = vmatpush1.msra.mxu0 %v799
        %842 = vmatprep.subr.mxu0 0.0
        %843 = vmatpush1.msra.mxu0 %v798
        %844 = vmatprep.subr.mxu0 0.0
        %845 = vmatpush1.msra.mxu0 %v797
        %846 = vmatprep.subr.mxu0 0.0
        %847 = vmatpush1.msra.mxu0 %v796
        %848 = vmatprep.subr.mxu0 0.0
        %849 = vmatpush1.msra.mxu0 %v795
        %850 = vmatprep.subr.mxu0 0.0
        %851 = vmatpush2.msra.mxu0 0.0
        %852 = vmatprep.subr.mxu0 0.0
        %853 = vmatpush2.msra.mxu0 0.0
        %854 = vmatprep.subr.mxu0 0.0
        %855 = vmatpush2.msra.mxu0 0.0
        %856 = vmatprep.subr.mxu0 0.0
        %857 = vmatpush2.msra.mxu0 0.0
        %858 = vmatprep.subr.mxu0 0.0
        %859 = vmatpush2.msra.mxu0 0.0
        %860 = vmatprep.subr.mxu0 0.0
        %861 = vmatpush2.msra.mxu0 0.0
        %862 = vmatprep.subr.mxu0 0.0
        %863 = vmatpush2.msra.mxu0 0.0
        %864 = vmatprep.subr.mxu0 0.0
        %865 = vmatpush2.msra.mxu0 0.0
        %866 = vmatprep.subr.mxu0 0.0
        %867 = vmatpush2.msra.mxu0 0.0
        %868 = vmatprep.subr.mxu0 0.0
        %869 = vmatpush2.msra.mxu0 0.0
        %870 = vmatprep.subr.mxu0 0.0
        %871 = vmatpush2.msra.mxu0 0.0
        %872 = vmatprep.subr.mxu0 0.0
        %873 = vmatpush2.msra.mxu0 0.0
        %874 = vmatprep.subr.mxu0 0.0
        %875 = vmatpush2.msra.mxu0 0.0
        %876 = vmatprep.subr.mxu0 0.0
        %877 = vmatpush2.msra.mxu0 0.0
        %878 = vmatprep.subr.mxu0 0.0
        %879 = vmatpush2.msra.mxu0 0.0
        %880 = vmatprep.subr.mxu0 0.0
        %881 = vmatpush2.msra.mxu0 0.0
        %882 = vmatprep.mubr.f32.mxu0 0.0
        %883 = vmatmul.mubr.f32.gmra.mxu0 %v779
        %v884 = vpop.f32.mrf.mxu0
        %v885 = vadd.f32 %v816, %v884
        %v886 = vpop.f32.mrf.mxu0
        %887 = vmatprep.mubr.f32.mxu0 0.0
        %888 = vmatmul.mubr.f32.gmra.mxu0 %v780
        %v889 = vpop.f32.mrf.mxu0
        %v890 = vadd.f32 %v816, %v889
        %v891 = vpop.f32.mrf.mxu0
        %892 = vmatprep.mubr.f32.mxu0 0.0
        %893 = vmatmul.mubr.f32.gmra.mxu0 %v781
        %v894 = vpop.f32.mrf.mxu0
        %v895 = vadd.f32 %v816, %v894
        %v896 = vpop.f32.mrf.mxu0
        %897 = vmatprep.mubr.f32.mxu0 0.0
        %898 = vmatmul.mubr.f32.gmra.mxu0 %v782
        %v899 = vpop.f32.mrf.mxu0
        %v900 = vadd.f32 %v816, %v899
        %v901 = vpop.f32.mrf.mxu0
        %902 = vmatprep.mubr.f32.mxu0 0.0
        %903 = vmatmul.mubr.f32.gmra.mxu0 %v783
        %v904 = vpop.f32.mrf.mxu0
        %v905 = vadd.f32 %v816, %v904
        %v906 = vpop.f32.mrf.mxu0
        %907 = vmatprep.mubr.f32.mxu0 0.0
        %908 = vmatmul.mubr.f32.gmra.mxu0 %v784
        %v909 = vpop.f32.mrf.mxu0
        %v910 = vadd.f32 %v816, %v909
        %v911 = vpop.f32.mrf.mxu0
        %912 = vmatprep.mubr.f32.mxu0 0.0
        %913 = vmatmul.mubr.f32.gmra.mxu0 %v785
        %v914 = vpop.f32.mrf.mxu0
        %v915 = vadd.f32 %v816, %v914
        %v916 = vpop.f32.mrf.mxu0
        %917 = vmatprep.mubr.f32.mxu0 0.0
        %918 = vmatmul.mubr.f32.gmra.mxu0 %v786
        %v919 = vpop.f32.mrf.mxu0
        %v920 = vadd.f32 %v816, %v919
        %v921 = vpop.f32.mrf.mxu0
        %922 = vmatprep.mubr.f32.mxu0 0.0
        %923 = vmatmul.mubr.f32.gmra.mxu0 %v787
        %v924 = vpop.f32.mrf.mxu0
        %v925 = vadd.f32 %v816, %v924
        %v926 = vpop.f32.mrf.mxu0
        %927 = vmatprep.mubr.f32.mxu0 0.0
        %928 = vmatmul.mubr.f32.gmra.mxu0 %v788
        %v929 = vpop.f32.mrf.mxu0
        %v930 = vadd.f32 %v816, %v929
        %v931 = vpop.f32.mrf.mxu0
        %932 = vmatprep.mubr.f32.mxu0 0.0
        %933 = vmatmul.mubr.f32.gmra.mxu0 %v789
        %v934 = vpop.f32.mrf.mxu0
        %v935 = vadd.f32 %v816, %v934
        %v936 = vpop.f32.mrf.mxu0
        %937 = vmatprep.mubr.f32.mxu0 0.0
        %938 = vmatmul.mubr.f32.gmra.mxu0 %v790
        %v939 = vpop.f32.mrf.mxu0
        %v940 = vadd.f32 %v816, %v939
        %v941 = vpop.f32.mrf.mxu0
        %942 = vmatprep.mubr.f32.mxu0 0.0
        %943 = vmatmul.mubr.f32.gmra.mxu0 %v791
        %v944 = vpop.f32.mrf.mxu0
        %v945 = vadd.f32 %v816, %v944
        %v946 = vpop.f32.mrf.mxu0
        %947 = vmatprep.mubr.f32.mxu0 0.0
        %948 = vmatmul.mubr.f32.gmra.mxu0 %v792
        %v949 = vpop.f32.mrf.mxu0
        %v950 = vadd.f32 %v816, %v949
        %v951 = vpop.f32.mrf.mxu0
        %952 = vmatprep.mubr.f32.mxu0 0.0
        %953 = vmatmul.mubr.f32.gmra.mxu0 %v793
        %v954 = vpop.f32.mrf.mxu0
        %v955 = vadd.f32 %v816, %v954
        %v956 = vpop.f32.mrf.mxu0
        %957 = vmatprep.mubr.f32.mxu0 0.0
        %958 = vmatmul.mubr.f32.gmra.mxu0 %v794
        %v959 = vpop.f32.mrf.mxu0
        %v960 = vadd.f32 %v816, %v959
        %v961 = vpop.f32.mrf.mxu0
        %962 = vdwg.mxu0
        %v963 = vmax.f32 %v885, 0.0
        %v964 = vmax.f32 %v890, 0.0
        %v965 = vmax.f32 %v895, 0.0
        %v966 = vmax.f32 %v900, 0.0
        %v967 = vmax.f32 %v905, 0.0
        %v968 = vmax.f32 %v910, 0.0
        %v969 = vmax.f32 %v915, 0.0
        %v970 = vmax.f32 %v920, 0.0
        %v971 = vmax.f32 %v925, 0.0
        %v972 = vmax.f32 %v930, 0.0
        %v973 = vmax.f32 %v935, 0.0
        %v974 = vmax.f32 %v940, 0.0
        %v975 = vmax.f32 %v945, 0.0
        %v976 = vmax.f32 %v950, 0.0
        %v977 = vmax.f32 %v955, 0.0
        %v978 = vmax.f32 %v960, 0.0
        %v979 = vld [vmem:[#allocation10] sm:$0xff]
        %v980 = vld [vmem:[#allocation10 + $0x8] sm:$0xff]
        %v981 = vld [vmem:[#allocation10 + $0x10] sm:$0xff]
        %v982 = vld [vmem:[#allocation10 + $0x18] sm:$0xff]
        %v983 = vld [vmem:[#allocation10 + $0x20] sm:$0xff]
        %v984 = vld [vmem:[#allocation10 + $0x28] sm:$0xff]
        %v985 = vld [vmem:[#allocation10 + $0x30] sm:$0xff]
        %v986 = vld [vmem:[#allocation10 + $0x38] sm:$0xff]
        %v987 = vld [vmem:[#allocation10 + $0x40] sm:$0xff]
        %v988 = vld [vmem:[#allocation10 + $0x48] sm:$0xff]
        %v989 = vld [vmem:[#allocation10 + $0x50] sm:$0xff]
        %v990 = vld [vmem:[#allocation10 + $0x58] sm:$0xff]
        %v991 = vld [vmem:[#allocation10 + $0x60] sm:$0xff]
        %v992 = vld [vmem:[#allocation10 + $0x68] sm:$0xff]
        %v993 = vld [vmem:[#allocation10 + $0x70] sm:$0xff]
        %v994 = vld [vmem:[#allocation10 + $0x78] sm:$0xff]
        %v995 = vld [vmem:[%s8] sm:$0x1]
        %v997 = vlaneseq
        %v998 = vshrl.u32 %v997, 7
        %v999 = vsub.s32 0, %v998
        %v1000 = vrot.slane %v995, %v999
        %1002 = vmatprep.subr.mxu0 0.0
        %1003 = vmatpush1.msra.mxu0 %v994
        %1004 = vmatprep.subr.mxu0 0.0
        %1005 = vmatpush1.msra.mxu0 %v993
        %1006 = vmatprep.subr.mxu0 0.0
        %1007 = vmatpush1.msra.mxu0 %v992
        %1008 = vmatprep.subr.mxu0 0.0
        %1009 = vmatpush1.msra.mxu0 %v991
        %1010 = vmatprep.subr.mxu0 0.0
        %1011 = vmatpush1.msra.mxu0 %v990
        %1012 = vmatprep.subr.mxu0 0.0
        %1013 = vmatpush1.msra.mxu0 %v989
        %1014 = vmatprep.subr.mxu0 0.0
        %1015 = vmatpush1.msra.mxu0 %v988
        %1016 = vmatprep.subr.mxu0 0.0
        %1017 = vmatpush1.msra.mxu0 %v987
        %1018 = vmatprep.subr.mxu0 0.0
        %1019 = vmatpush1.msra.mxu0 %v986
        %1020 = vmatprep.subr.mxu0 0.0
        %1021 = vmatpush1.msra.mxu0 %v985
        %1022 = vmatprep.subr.mxu0 0.0
        %1023 = vmatpush1.msra.mxu0 %v984
        %1024 = vmatprep.subr.mxu0 0.0
        %1025 = vmatpush1.msra.mxu0 %v983
        %1026 = vmatprep.subr.mxu0 0.0
        %1027 = vmatpush1.msra.mxu0 %v982
        %1028 = vmatprep.subr.mxu0 0.0
        %1029 = vmatpush1.msra.mxu0 %v981
        %1030 = vmatprep.subr.mxu0 0.0
        %1031 = vmatpush1.msra.mxu0 %v980
        %1032 = vmatprep.subr.mxu0 0.0
        %1033 = vmatpush1.msra.mxu0 %v979
        %1034 = vmatprep.subr.mxu0 0.0
        %1035 = vmatpush2.msra.mxu0 0.0
        %1036 = vmatprep.subr.mxu0 0.0
        %1037 = vmatpush2.msra.mxu0 0.0
        %1038 = vmatprep.subr.mxu0 0.0
        %1039 = vmatpush2.msra.mxu0 0.0
        %1040 = vmatprep.subr.mxu0 0.0
        %1041 = vmatpush2.msra.mxu0 0.0
        %1042 = vmatprep.subr.mxu0 0.0
        %1043 = vmatpush2.msra.mxu0 0.0
        %1044 = vmatprep.subr.mxu0 0.0
        %1045 = vmatpush2.msra.mxu0 0.0
        %1046 = vmatprep.subr.mxu0 0.0
        %1047 = vmatpush2.msra.mxu0 0.0
        %1048 = vmatprep.subr.mxu0 0.0
        %1049 = vmatpush2.msra.mxu0 0.0
        %1050 = vmatprep.subr.mxu0 0.0
        %1051 = vmatpush2.msra.mxu0 0.0
        %1052 = vmatprep.subr.mxu0 0.0
        %1053 = vmatpush2.msra.mxu0 0.0
        %1054 = vmatprep.subr.mxu0 0.0
        %1055 = vmatpush2.msra.mxu0 0.0
        %1056 = vmatprep.subr.mxu0 0.0
        %1057 = vmatpush2.msra.mxu0 0.0
        %1058 = vmatprep.subr.mxu0 0.0
        %1059 = vmatpush2.msra.mxu0 0.0
        %1060 = vmatprep.subr.mxu0 0.0
        %1061 = vmatpush2.msra.mxu0 0.0
        %1062 = vmatprep.subr.mxu0 0.0
        %1063 = vmatpush2.msra.mxu0 0.0
        %1064 = vmatprep.subr.mxu0 0.0
        %1065 = vmatpush2.msra.mxu0 0.0
        %1066 = vmatprep.mubr.f32.mxu0 0.0
        %1067 = vmatmul.mubr.f32.gmra.mxu0 %v963
        %v1068 = vpop.f32.mrf.mxu0
        %v1069 = vadd.f32 %v1000, %v1068
        %v1070 = vpop.f32.mrf.mxu0
        %1071 = vmatprep.mubr.f32.mxu0 0.0
        %1072 = vmatmul.mubr.f32.gmra.mxu0 %v964
        %v1073 = vpop.f32.mrf.mxu0
        %v1074 = vadd.f32 %v1000, %v1073
        %v1075 = vpop.f32.mrf.mxu0
        %1076 = vmatprep.mubr.f32.mxu0 0.0
        %1077 = vmatmul.mubr.f32.gmra.mxu0 %v965
        %v1078 = vpop.f32.mrf.mxu0
        %v1079 = vadd.f32 %v1000, %v1078
        %v1080 = vpop.f32.mrf.mxu0
        %1081 = vmatprep.mubr.f32.mxu0 0.0
        %1082 = vmatmul.mubr.f32.gmra.mxu0 %v966
        %v1083 = vpop.f32.mrf.mxu0
        %v1084 = vadd.f32 %v1000, %v1083
        %v1085 = vpop.f32.mrf.mxu0
        %1086 = vmatprep.mubr.f32.mxu0 0.0
        %1087 = vmatmul.mubr.f32.gmra.mxu0 %v967
        %v1088 = vpop.f32.mrf.mxu0
        %v1089 = vadd.f32 %v1000, %v1088
        %v1090 = vpop.f32.mrf.mxu0
        %1091 = vmatprep.mubr.f32.mxu0 0.0
        %1092 = vmatmul.mubr.f32.gmra.mxu0 %v968
        %v1093 = vpop.f32.mrf.mxu0
        %v1094 = vadd.f32 %v1000, %v1093
        %v1095 = vpop.f32.mrf.mxu0
        %1096 = vmatprep.mubr.f32.mxu0 0.0
        %1097 = vmatmul.mubr.f32.gmra.mxu0 %v969
        %v1098 = vpop.f32.mrf.mxu0
        %v1099 = vadd.f32 %v1000, %v1098
        %v1100 = vpop.f32.mrf.mxu0
        %1101 = vmatprep.mubr.f32.mxu0 0.0
        %1102 = vmatmul.mubr.f32.gmra.mxu0 %v970
        %v1103 = vpop.f32.mrf.mxu0
        %v1104 = vadd.f32 %v1000, %v1103
        %v1105 = vpop.f32.mrf.mxu0
        %1106 = vmatprep.mubr.f32.mxu0 0.0
        %1107 = vmatmul.mubr.f32.gmra.mxu0 %v971
        %v1108 = vpop.f32.mrf.mxu0
        %v1109 = vadd.f32 %v1000, %v1108
        %v1110 = vpop.f32.mrf.mxu0
        %1111 = vmatprep.mubr.f32.mxu0 0.0
        %1112 = vmatmul.mubr.f32.gmra.mxu0 %v972
        %v1113 = vpop.f32.mrf.mxu0
        %v1114 = vadd.f32 %v1000, %v1113
        %v1115 = vpop.f32.mrf.mxu0
        %1116 = vmatprep.mubr.f32.mxu0 0.0
        %1117 = vmatmul.mubr.f32.gmra.mxu0 %v973
        %v1118 = vpop.f32.mrf.mxu0
        %v1119 = vadd.f32 %v1000, %v1118
        %v1120 = vpop.f32.mrf.mxu0
        %1121 = vmatprep.mubr.f32.mxu0 0.0
        %1122 = vmatmul.mubr.f32.gmra.mxu0 %v974
        %v1123 = vpop.f32.mrf.mxu0
        %v1124 = vadd.f32 %v1000, %v1123
        %v1125 = vpop.f32.mrf.mxu0
        %1126 = vmatprep.mubr.f32.mxu0 0.0
        %1127 = vmatmul.mubr.f32.gmra.mxu0 %v975
        %v1128 = vpop.f32.mrf.mxu0
        %v1129 = vadd.f32 %v1000, %v1128
        %v1130 = vpop.f32.mrf.mxu0
        %1131 = vmatprep.mubr.f32.mxu0 0.0
        %1132 = vmatmul.mubr.f32.gmra.mxu0 %v976
        %v1133 = vpop.f32.mrf.mxu0
        %v1134 = vadd.f32 %v1000, %v1133
        %v1135 = vpop.f32.mrf.mxu0
        %1136 = vmatprep.mubr.f32.mxu0 0.0
        %1137 = vmatmul.mubr.f32.gmra.mxu0 %v977
        %v1138 = vpop.f32.mrf.mxu0
        %v1139 = vadd.f32 %v1000, %v1138
        %v1140 = vpop.f32.mrf.mxu0
        %1141 = vmatprep.mubr.f32.mxu0 0.0
        %1142 = vmatmul.mubr.f32.gmra.mxu0 %v978
        %v1143 = vpop.f32.mrf.mxu0
        %v1144 = vadd.f32 %v1000, %v1143
        %v1145 = vpop.f32.mrf.mxu0
        %1146 = vdwg.mxu0
        %v1147 = vmax.f32 %v1069, 0.0
        %v1148 = vmax.f32 %v1074, 0.0
        %v1149 = vmax.f32 %v1079, 0.0
        %v1150 = vmax.f32 %v1084, 0.0
        %v1151 = vmax.f32 %v1089, 0.0
        %v1152 = vmax.f32 %v1094, 0.0
        %v1153 = vmax.f32 %v1099, 0.0
        %v1154 = vmax.f32 %v1104, 0.0
        %v1155 = vmax.f32 %v1109, 0.0
        %v1156 = vmax.f32 %v1114, 0.0
        %v1157 = vmax.f32 %v1119, 0.0
        %v1158 = vmax.f32 %v1124, 0.0
        %v1159 = vmax.f32 %v1129, 0.0
        %v1160 = vmax.f32 %v1134, 0.0
        %v1161 = vmax.f32 %v1139, 0.0
        %v1162 = vmax.f32 %v1144, 0.0
        %1163 = vst [vmem:[%s408] sm:$0xff] %v1147
        %1164 = vst [vmem:[%s408 + $0x8] sm:$0xff] %v1148
        %1165 = vst [vmem:[%s408 + $0x10] sm:$0xff] %v1149
        %1166 = vst [vmem:[%s408 + $0x18] sm:$0xff] %v1150
        %1167 = vst [vmem:[%s408 + $0x20] sm:$0xff] %v1151
        %1168 = vst [vmem:[%s408 + $0x28] sm:$0xff] %v1152
        %1169 = vst [vmem:[%s408 + $0x30] sm:$0xff] %v1153
        %1170 = vst [vmem:[%s408 + $0x38] sm:$0xff] %v1154
        %1171 = vst [vmem:[%s408 + $0x40] sm:$0xff] %v1155
        %1172 = vst [vmem:[%s408 + $0x48] sm:$0xff] %v1156
        %1173 = vst [vmem:[%s408 + $0x50] sm:$0xff] %v1157
        %1174 = vst [vmem:[%s408 + $0x58] sm:$0xff] %v1158
        %1175 = vst [vmem:[%s408 + $0x60] sm:$0xff] %v1159
        %1176 = vst [vmem:[%s408 + $0x68] sm:$0xff] %v1160
        %1177 = vst [vmem:[%s408 + $0x70] sm:$0xff] %v1161
        %1178 = vst [vmem:[%s408 + $0x78] sm:$0xff] %v1162
        %s1179 = sand.u32 %s230, 1
        %s1180 = scalar_lea.sflag [#allocation4], %s1179
        %s1181 = sand.u32 %s230, 1
        %s1182 = smul.addr %s1181, 128
        %s1183 = scalar_lea.vmem [#allocation11], %s1182
        // Predicated region
        $region77: #{tpu_custom_call.1} parent=55 // pred_check
          %p1184 = pneg %p240
        $region78: #{tpu_custom_call.1} parent=55 // pred_check_branch
          %1186 = sbr.rel (%p1184) target = $region80
        $region79: #{tpu_custom_call.1} parent=55 // pred_region
          %s1187 = smul.u32 16, %s28
          %s1189 = ssub.s32 2048, 2048
          %1190 = vsyncadd %s1180, %s1189
          %s1191 = smul.addr %s1187, 128
          %s1192 = scalar_lea.hbm %s9, %s1191
          %s1193 = sshll.u32 %s1183, 4
          %s1194 = int_to_ptr.vmem [resolvable:$true] %s1193
          %1199 = dma.vmem_to_hbm [thread:$0]  %s1194, 2048, %s1192, %s1180, 128, 128, 8
        $region80: #{tpu_custom_call.1} parent=55 // pred_fallthru
          _
      $region56: #{tpu_custom_call.1} parent=5 // pred_fallthru
        _
      %p1200 = scmp.le.s32.totalorder 2, %s23
      // Predicated region
      $region81: #{tpu_custom_call.1} parent=5 // pred_check
        %p1201 = pneg %p1200
      $region82: #{tpu_custom_call.1} parent=5 // pred_check_branch
        %1203 = sbr.rel (%p1201) target = $region84
      $region83: #{tpu_custom_call.1} parent=5 // pred_region
        %s1204 = ssub.s32 %s23, 2
        // Predicated region
        $region85: #{tpu_custom_call.1} parent=83 // pred_check
          %p1205 = pneg %p246
        $region86: #{tpu_custom_call.1} parent=83 // pred_check_branch
          %1207 = sbr.rel (%p1205) target = $region88
        $region87: #{tpu_custom_call.1} parent=83 // pred_region
          %s1208 = sand.u32 %s231, 1
          %s1209 = scalar_lea.sflag [#allocation4], %s1208
          %s1210 = sand.u32 %s231, 1
          %s1211 = smul.addr %s1210, 128
          %s1212 = scalar_lea.vmem [#allocation11], %s1211
          %1213 = dma.done %s1209, 2048
        $region88: #{tpu_custom_call.1} parent=83 // pred_fallthru
          _
      $region84: #{tpu_custom_call.1} parent=5 // pred_fallthru
        _
    $region6: #{tpu_custom_call.1} parent=1 // loop_footer
      %s27 = sadd.s32 1, %s23
    $region7: #{tpu_custom_call.1} parent=1 // loop_footer_branch
      %22 = sbr.rel target = $region3
    $region8: #{tpu_custom_call.1} parent=1 // loop_exit
      _
    %1214 = vsyncpa [#allocation3], 1
    %s1215 = scalar_lea.sflag [#allocation3], 1
    %1216 = vsyncpa %s1215, 1
    %1217 = vsyncpa [#allocation6], 1
    %1218 = vsyncpa [#allocation9], 1
    %1219 = vsyncpa [#allocation4], 1
    %s1220 = scalar_lea.sflag [#allocation4], 1
    %1221 = vsyncpa %s1220, 1

</llo_original>
